<compile_context>
chip_gen: v7x
topology: tpu7x:2x2x1
jax: 0.10.0
libtpu: 0.0.40
codegen_flags: <defaults>
</compile_context>

<pallas_src>
import functools

import jax
import jax.numpy as jnp
from jax.experimental import pallas as pl
from jax.experimental.pallas import tpu as pltpu


def _round_up(x, m):
    return (x + m - 1) // m * m


def _conv_stats_kernel(p_ref, w_ref, conv_ref, psum_ref, pssq_ref):
    """Pass 1 (parallel over M tiles): one MXU matmul + per-tile channel stats.

    p_ref    : [TM, Kpad]    bf16 im2col patches tile
    w_ref    : [Kpad, Cpad]  bf16 reshaped conv weights (constant block)
    conv_ref : [TM, Cpad]    bf16 conv output tile (bf16 store halves HBM bytes)
    psum_ref : [1, 1, Cpad]  f32 per-tile per-channel sum
    pssq_ref : [1, 1, Cpad]  f32 per-tile per-channel sum of squares
    """
    # Lane-dense MXU pass: bf16 x bf16 -> f32 accumulation.
    acc = jnp.dot(p_ref[...], w_ref[...], preferred_element_type=jnp.float32)
    conv_ref[...] = acc.astype(conv_ref.dtype)

    # Stats come from the f32 accumulator (not the bf16 store) so the BN
    # statistics stay f32-accurate.  Zero-padded rows / channels contribute 0.
    psum_ref[...] = jnp.sum(acc, axis=0, keepdims=True)[None]
    pssq_ref[...] = jnp.sum(acc * acc, axis=0, keepdims=True)[None]


def _bn_relu_kernel(conv_ref, scale_ref, shift_ref, o_ref):
    """Pass 2: pure streaming y = relu(conv * scale + shift).

    scale / shift are the pre-folded BatchNorm affine (computed once in the
    wrapper), so this pass is only vld / fma / max / vst.
    """
    y = conv_ref[...].astype(jnp.float32) * scale_ref[...] + shift_ref[...]
    o_ref[...] = jnp.maximum(y, 0.0).astype(o_ref.dtype)


@functools.partial(
    jax.jit,
    static_argnames=("padding", "dilation", "eps", "tile_m", "tile_m2"))
def aspp_forward(x_nchw, w_oihw, gamma, beta, *, padding, dilation,
                 eps=1e-5, tile_m=256, tile_m2=1024):
    """Wrapper matching the PyTorch _ASPP forward (NCHW in, NCHW out)."""
    N, Cin, H, W = x_nchw.shape
    Cout, Cin_w, K, K2 = w_oihw.shape
    assert Cin == Cin_w and K == K2

    Ho = H + 2 * padding - dilation * (K - 1)
    Wo = W + 2 * padding - dilation * (K - 1)
    M = N * Ho * Wo
    Kc = K * K * Cin

    # Lane-dense padded dims (zeros in the contraction / extra channels inert).
    Kpad = _round_up(Kc, 128)
    Cpad = _round_up(Cout, 128)

    # Pass-1 tile (MXU pass), multiple of 16 for bf16 sublane packing.
    TM = _round_up(min(tile_m, _round_up(M, 16)), 16)
    # Pass-2 tile: larger streaming tile, constrained to a multiple of TM so a
    # single Mpad padding satisfies both grids.
    TM2 = min(tile_m2, _round_up(M, TM))
    TM2 = max(TM, (TM2 // TM) * TM)
    Mpad = _round_up(M, TM2)
    n1 = Mpad // TM
    n2 = Mpad // TM2

    # ---- layout plumbing (plain JAX): NCHW -> NHWC, spatial pad, im2col ----
    # Cast to bf16 BEFORE the 9x tap expansion so the im2col intermediate is
    # built in bf16 (the MXU sees bf16 either way).
    x_nhwc = jnp.transpose(x_nchw, (0, 2, 3, 1)).astype(jnp.bfloat16)
    x_sp = jnp.pad(x_nhwc, ((0, 0), (padding, padding), (padding, padding), (0, 0)))
    taps = [x_sp[:, kh * dilation:kh * dilation + Ho,
                 kw * dilation:kw * dilation + Wo, :]
            for kh in range(K) for kw in range(K)]
    # [N, Ho, Wo, K*K, Cin] -> [M, Kc]   (column order = (kh, kw, cin))
    patches = jnp.stack(taps, axis=3).reshape(M, Kc)
    patches = jnp.pad(patches, ((0, Mpad - M), (0, Kpad - Kc)))

    # OIHW -> [kh, kw, cin, cout] -> [Kc, Cout], same (kh, kw, cin) row order.
    w2 = jnp.transpose(w_oihw, (2, 3, 1, 0)).astype(jnp.float32).reshape(Kc, Cout)
    w2 = jnp.pad(w2, ((0, Kpad - Kc), (0, Cpad - Cout))).astype(jnp.bfloat16)

    # ---- pass 1: parallel tiled im2col matmul + per-tile channel stats ----
    conv, psum, pssq = pl.pallas_call(
        _conv_stats_kernel,
        out_shape=(jax.ShapeDtypeStruct((Mpad, Cpad), jnp.bfloat16),
                   jax.ShapeDtypeStruct((n1, 1, Cpad), jnp.float32),
                   jax.ShapeDtypeStruct((n1, 1, Cpad), jnp.float32)),
        grid_spec=pltpu.PrefetchScalarGridSpec(
            num_scalar_prefetch=0,
            grid=(n1,),
            in_specs=[pl.BlockSpec((TM, Kpad), lambda i: (i, 0)),
                      pl.BlockSpec((Kpad, Cpad), lambda i: (0, 0))],
            out_specs=[pl.BlockSpec((TM, Cpad), lambda i: (i, 0)),
                       pl.BlockSpec((1, 1, Cpad), lambda i: (i, 0, 0)),
                       pl.BlockSpec((1, 1, Cpad), lambda i: (i, 0, 0))]),
        compiler_params=pltpu.CompilerParams(
            dimension_semantics=("parallel",),          # megacore-able on v7x
            vmem_limit_bytes=64 * 1024 * 1024),
        cost_estimate=pl.CostEstimate(
            flops=2 * Mpad * Kpad * Cpad,
            transcendentals=0,
            bytes_accessed=(Mpad * Kpad * 2 + Kpad * Cpad * 2
                            + Mpad * Cpad * 2 + 2 * n1 * Cpad * 4)),
    )(patches, w2)

    # ---- BN finalization (tiny [Cpad]-wide math, done once in the wrapper) ----
    csum = jnp.sum(psum[:, 0, :], axis=0)               # (Cpad,)
    cssq = jnp.sum(pssq[:, 0, :], axis=0)               # (Cpad,)
    inv_n = 1.0 / float(M)
    mean = csum * inv_n
    var = jnp.maximum(cssq * inv_n - mean * mean, 0.0)  # clamp cancellation
    inv_std = jax.lax.rsqrt(var + eps)
    g = jnp.pad(gamma.astype(jnp.float32), (0, Cpad - Cout))
    b = jnp.pad(beta.astype(jnp.float32), (0, Cpad - Cout))
    scale = (g * inv_std).reshape(1, Cpad)
    shift = (b - mean * g * inv_std).reshape(1, Cpad)

    # ---- pass 2: streaming affine + ReLU, aliased in-place onto the conv slab ----
    out_flat = pl.pallas_call(
        _bn_relu_kernel,
        out_shape=jax.ShapeDtypeStruct((Mpad, Cpad), jnp.bfloat16),
        grid_spec=pltpu.PrefetchScalarGridSpec(
            num_scalar_prefetch=0,
            grid=(n2,),
            in_specs=[pl.BlockSpec((TM2, Cpad), lambda i: (i, 0)),
                      pl.BlockSpec((1, Cpad), lambda i: (0, 0)),
                      pl.BlockSpec((1, Cpad), lambda i: (0, 0))],
            out_specs=pl.BlockSpec((TM2, Cpad), lambda i: (i, 0))),
        compiler_params=pltpu.CompilerParams(
            dimension_semantics=("parallel",),            # megacore on v7x
            vmem_limit_bytes=64 * 1024 * 1024),
        input_output_aliases={0: 0},                      # reuse the conv slab
        cost_estimate=pl.CostEstimate(
            flops=3 * Mpad * Cpad,
            transcendentals=0,
            bytes_accessed=2 * Mpad * Cpad * 2 + 2 * Cpad * 4),
    )(conv, scale, shift)

    # Slice off row / channel padding, back to NCHW (f32 like the PyTorch module).
    out = out_flat[:M, :Cout].astype(jnp.float32).reshape(N, Ho, Wo, Cout)
    return jnp.transpose(out, (0, 3, 1, 2))


def _reference(x_nchw, w_oihw, gamma, beta, *, padding, dilation, eps=1e-5):
    """Pure-JAX f32 reference (conv + train-mode BN + ReLU)."""
    conv = jax.lax.conv_general_dilated(
        x_nchw.astype(jnp.float32), w_oihw.astype(jnp.float32),
        window_strides=(1, 1),
        padding=((padding, padding), (padding, padding)),
        rhs_dilation=(dilation, dilation),
        dimension_numbers=("NCHW", "OIHW", "NCHW"),
        precision=jax.lax.Precision.HIGHEST)
    mean = conv.mean(axis=(0, 2, 3), keepdims=True)
    var = ((conv - mean) ** 2).mean(axis=(0, 2, 3), keepdims=True)
    y = (conv - mean) / jnp.sqrt(var + eps)
    y = y * gamma.reshape(1, -1, 1, 1) + beta.reshape(1, -1, 1, 1)
    return jnp.maximum(y, 0.0)


if __name__ == "__main__":
    # _ASPP(inplanes, planes, 3, padding=d, dilation=d, momentum) at small shapes.
    inplanes, planes = 4, 8
    kernel_size, dilation, padding = 3, 2, 2
    N, H, W = 2, 16, 16

    key = jax.random.PRNGKey(0)
    k_x, k_w, k_g, k_b = jax.random.split(key, 4)

    x = jax.random.normal(k_x, (N, inplanes, H, W), dtype=jnp.float32)
    fan_in = inplanes * kernel_size * kernel_size
    w = jax.random.normal(k_w, (planes, inplanes, kernel_size, kernel_size),
                          dtype=jnp.float32) / jnp.sqrt(fan_in)
    gamma = 1.0 + 0.1 * jax.random.normal(k_g, (planes,), dtype=jnp.float32)
    beta = 0.1 * jax.random.normal(k_b, (planes,), dtype=jnp.float32)

    out = aspp_forward(x, w, gamma, beta, padding=padding, dilation=dilation)
    out = jax.block_until_ready(out)

    ref = _reference(x, w, gamma, beta, padding=padding, dilation=dilation)
    assert out.shape == ref.shape == (N, planes, H, W), (out.shape, ref.shape)
    # bf16 MXU inputs + bf16 conv/output slabs (f32 accumulation & stats)
    # => looser tolerance than a pure-f32 pipeline.
    assert jnp.allclose(out, ref, atol=7.5e-2, rtol=7.5e-2), \
        float(jnp.max(jnp.abs(out - ref)))

    print("KERNEL_OK")
</pallas_src>

<mosaic_0001>
module attributes {stable_mosaic.version = 11 : i64} {
  func.func @_conv_stats_kernel(%arg0: i32, %arg1: memref<256x128xbf16, #tpu.memory_space<vmem>>, %arg2: memref<128x128xbf16, #tpu.memory_space<vmem>>, %arg3: memref<256x128xbf16, #tpu.memory_space<vmem>>, %arg4: memref<1x1x128xf32, #tpu.memory_space<vmem>>, %arg5: memref<1x1x128xf32, #tpu.memory_space<vmem>>) attributes {dimension_semantics = [#tpu.dimension_semantics<parallel>], iteration_bounds = array<i64: 2>, scalar_prefetch = 0 : i64, scratch_operands = 0 : i64, tpu.core_type = #tpu.core_type<tc>, window_params = [{transform_indices = @transform_0, window_bounds = array<i64: 256, 128>}, {pipeline_mode = #tpu.pipeline_mode<synchronous>, transform_indices = @transform_1, window_bounds = array<i64: 128, 128>}, {transform_indices = @transform_2, window_bounds = array<i64: 256, 128>}, {transform_indices = @transform_3, window_bounds = array<i64: 1, 1, 128>}, {transform_indices = @transform_4, window_bounds = array<i64: 1, 1, 128>}]} {
    %c0 = arith.constant 0 : index
    %c0_0 = arith.constant 0 : index
    %0 = vector.load %arg1[%c0, %c0_0] : memref<256x128xbf16, #tpu.memory_space<vmem>>, vector<256x128xbf16>
    %c0_1 = arith.constant 0 : index
    %c0_2 = arith.constant 0 : index
    %1 = vector.load %arg2[%c0_1, %c0_2] : memref<128x128xbf16, #tpu.memory_space<vmem>>, vector<128x128xbf16>
    %cst = arith.constant dense<0.000000e+00> : vector<256x128xf32>
    %2 = tpu.matmul %0, %1, %cst {dimension_numbers = #tpu.dot_dimension_numbers<[1], [0], [0], [1], [0, 0, 1, 1], [], []>} : vector<256x128xbf16>, vector<128x128xbf16>, vector<256x128xf32> -> vector<256x128xf32>
    %3 = arith.truncf %2 : vector<256x128xf32> to vector<256x128xbf16>
    %c0_3 = arith.constant 0 : index
    %c0_4 = arith.constant 0 : index
    %4 = vector.load %arg3[%c0_3, %c0_4] : memref<256x128xbf16, #tpu.memory_space<vmem>>, vector<256x128xbf16>
    tpu.vector_store %arg3[%c0_3, %c0_4], %3 {strides = array<i32>} : memref<256x128xbf16, #tpu.memory_space<vmem>>, vector<256x128xbf16>,
    %cst_5 = arith.constant dense<0.000000e+00> : vector<128xf32>
    %5 = vector.multi_reduction <add>, %2, %cst_5 [0] : vector<256x128xf32> to vector<128xf32>
    %6 = vector.shape_cast %5 : vector<128xf32> to vector<1x128xf32>
    %7 = vector.shape_cast %6 : vector<1x128xf32> to vector<1x1x128xf32>
    %c0_6 = arith.constant 0 : index
    %c0_7 = arith.constant 0 : index
    %c0_8 = arith.constant 0 : index
    %8 = vector.load %arg4[%c0_6, %c0_7, %c0_8] : memref<1x1x128xf32, #tpu.memory_space<vmem>>, vector<1x1x128xf32>
    tpu.vector_store %arg4[%c0_6, %c0_7, %c0_8], %7 {strides = array<i32>} : memref<1x1x128xf32, #tpu.memory_space<vmem>>, vector<1x1x128xf32>,
    %9 = arith.mulf %2, %2 : vector<256x128xf32>
    %cst_9 = arith.constant dense<0.000000e+00> : vector<128xf32>
    %10 = vector.multi_reduction <add>, %9, %cst_9 [0] : vector<256x128xf32> to vector<128xf32>
    %11 = vector.shape_cast %10 : vector<128xf32> to vector<1x128xf32>
    %12 = vector.shape_cast %11 : vector<1x128xf32> to vector<1x1x128xf32>
    %c0_10 = arith.constant 0 : index
    %c0_11 = arith.constant 0 : index
    %c0_12 = arith.constant 0 : index
    %13 = vector.load %arg5[%c0_10, %c0_11, %c0_12] : memref<1x1x128xf32, #tpu.memory_space<vmem>>, vector<1x1x128xf32>
    tpu.vector_store %arg5[%c0_10, %c0_11, %c0_12], %12 {strides = array<i32>} : memref<1x1x128xf32, #tpu.memory_space<vmem>>, vector<1x1x128xf32>,
    return
  }
  func.func @transform_0(%arg0: i32) -> (i32, i32) {
    %c0_i32 = arith.constant 0 : i32
    %c0_i32_0 = arith.constant 0 : i32
    return %arg0, %c0_i32 : i32, i32
  }
  func.func @transform_1(%arg0: i32) -> (i32, i32) {
    %c0_i32 = arith.constant 0 : i32
    %c0_i32_0 = arith.constant 0 : i32
    %c0_i32_1 = arith.constant 0 : i32
    return %c0_i32, %c0_i32_0 : i32, i32
  }
  func.func @transform_2(%arg0: i32) -> (i32, i32) {
    %c0_i32 = arith.constant 0 : i32
    %c0_i32_0 = arith.constant 0 : i32
    return %arg0, %c0_i32 : i32, i32
  }
  func.func @transform_3(%arg0: i32) -> (i32, i32, i32) {
    %c0_i32 = arith.constant 0 : i32
    %c0_i32_0 = arith.constant 0 : i32
    %c0_i32_1 = arith.constant 0 : i32
    return %arg0, %c0_i32, %c0_i32_0 : i32, i32, i32
  }
  func.func @transform_4(%arg0: i32) -> (i32, i32, i32) {
    %c0_i32 = arith.constant 0 : i32
    %c0_i32_0 = arith.constant 0 : i32
    %c0_i32_1 = arith.constant 0 : i32
    return %arg0, %c0_i32, %c0_i32_0 : i32, i32, i32
  }
}

module attributes {stable_mosaic.version = 11 : i64} {
  func.func @_bn_relu_kernel(%arg0: i32, %arg1: memref<512x128xbf16, #tpu.memory_space<vmem>>, %arg2: memref<1x128xf32, #tpu.memory_space<vmem>>, %arg3: memref<1x128xf32, #tpu.memory_space<vmem>>, %arg4: memref<512x128xbf16, #tpu.memory_space<vmem>>) attributes {dimension_semantics = [#tpu.dimension_semantics<parallel>], iteration_bounds = array<i64: 1>, scalar_prefetch = 0 : i64, scratch_operands = 0 : i64, tpu.core_type = #tpu.core_type<tc>, window_params = [{transform_indices = @transform_0, window_bounds = array<i64: 512, 128>}, {pipeline_mode = #tpu.pipeline_mode<synchronous>, transform_indices = @transform_1, window_bounds = array<i64: 1, 128>}, {pipeline_mode = #tpu.pipeline_mode<synchronous>, transform_indices = @transform_2, window_bounds = array<i64: 1, 128>}, {transform_indices = @transform_3, window_bounds = array<i64: 512, 128>}]} {
    %c0 = arith.constant 0 : index
    %c0_0 = arith.constant 0 : index
    %0 = vector.load %arg1[%c0, %c0_0] : memref<512x128xbf16, #tpu.memory_space<vmem>>, vector<512x128xbf16>
    %1 = arith.extf %0 : vector<512x128xbf16> to vector<512x128xf32>
    %c0_1 = arith.constant 0 : index
    %c0_2 = arith.constant 0 : index
    %2 = vector.load %arg2[%c0_1, %c0_2] : memref<1x128xf32, #tpu.memory_space<vmem>>, vector<1x128xf32>
    %3 = vector.broadcast %2 : vector<1x128xf32> to vector<512x128xf32>
    %4 = arith.mulf %1, %3 : vector<512x128xf32>
    %c0_3 = arith.constant 0 : index
    %c0_4 = arith.constant 0 : index
    %5 = vector.load %arg3[%c0_3, %c0_4] : memref<1x128xf32, #tpu.memory_space<vmem>>, vector<1x128xf32>
    %6 = vector.broadcast %5 : vector<1x128xf32> to vector<512x128xf32>
    %7 = arith.addf %4, %6 : vector<512x128xf32>
    %cst = arith.constant 0.000000e+00 : f32
    %8 = vector.broadcast %cst : f32 to vector<512x128xf32>
    %9 = arith.maximumf %7, %8 : vector<512x128xf32>
    %10 = arith.truncf %9 : vector<512x128xf32> to vector<512x128xbf16>
    %c0_5 = arith.constant 0 : index
    %c0_6 = arith.constant 0 : index
    %11 = vector.load %arg4[%c0_5, %c0_6] : memref<512x128xbf16, #tpu.memory_space<vmem>>, vector<512x128xbf16>
    tpu.vector_store %arg4[%c0_5, %c0_6], %10 {strides = array<i32>} : memref<512x128xbf16, #tpu.memory_space<vmem>>, vector<512x128xbf16>,
    return
  }
  func.func @transform_0(%arg0: i32) -> (i32, i32) {
    %c0_i32 = arith.constant 0 : i32
    %c0_i32_0 = arith.constant 0 : i32
    return %arg0, %c0_i32 : i32, i32
  }
  func.func @transform_1(%arg0: i32) -> (i32, i32) {
    %c0_i32 = arith.constant 0 : i32
    %c0_i32_0 = arith.constant 0 : i32
    %c0_i32_1 = arith.constant 0 : i32
    return %c0_i32, %c0_i32_0 : i32, i32
  }
  func.func @transform_2(%arg0: i32) -> (i32, i32) {
    %c0_i32 = arith.constant 0 : i32
    %c0_i32_0 = arith.constant 0 : i32
    %c0_i32_1 = arith.constant 0 : i32
    return %c0_i32, %c0_i32_0 : i32, i32
  }
  func.func @transform_3(%arg0: i32) -> (i32, i32) {
    %c0_i32 = arith.constant 0 : i32
    %c0_i32_0 = arith.constant 0 : i32
    return %arg0, %c0_i32 : i32, i32
  }
}

</mosaic_0001>

<llo_original>
// kernel: aspp_forward.3
$region0: #{aspp_forward.3}
  #allocation0 [shape = 'u32[]', space=smem, size = 0x4, offset = 0x4, fixed_abs, tag = 'smem constant byte address 0x4 - core index']
  #allocation1 [shape = 'u32[144,128]{1,0:T(1,128)}', space=vmem, size = 0x12000, scoped, tag = 'internal scratch']
  %s0 = inlined_call_operand.hbm [shape: bf16[512,128], index: 0, kind: input, shape index: {}, may-alias: {0,3}]
  %s1 = inlined_call_operand.hbm [shape: f32[1,128], index: 1, kind: input, shape index: {}]
  %s2 = inlined_call_operand.hbm [shape: f32[1,128], index: 2, kind: input, shape index: {}]
  %s3 = inlined_call_operand.hbm [shape: bf16[512,128], index: 3, kind: output, shape index: {}, may-alias: {0,3}]
  %s4 = sld [smem:[#allocation0]]
  $region34: #{aspp_forward.3} parent=0
    _
  %s6 = ssub.s32 1, %s4
  %s7 = scalar_select 0, %s6, %s4
  $region1: #{aspp_forward.3} parent=0
    #allocation2 [shape = 'u8[131072]{0}', space=vmem, size = 0x20000, scoped, tag = 'input window, operand 0, single buffered']
    #allocation3 [shape = 's32[1]{0}', space=sflag, size = 0x4, scoped, tag = 'scoped memory for aspp_forward.3']
    #allocation4 [shape = 's32[1]{0}', space=sflag, size = 0x4, scoped, tag = 'scoped memory for aspp_forward.3']
    #allocation5 [shape = 'u8[512]{0}', space=vmem, size = 0x400, scoped, tag = 'input window, operand 1, single buffered']
    #allocation6 [shape = 's32[1]{0}', space=sflag, size = 0x4, scoped, tag = 'scoped memory for aspp_forward.3']
    #allocation7 [shape = 'u8[512]{0}', space=vmem, size = 0x400, scoped, tag = 'input window, operand 2, single buffered']
    #allocation8 [shape = 'u8[131072]{0}', space=vmem, size = 0x20000, scoped, tag = 'output window, operand 0, single buffered']
    %8 = vsyncpa [#allocation3], 0
    %9 = vsyncpa [#allocation6], 0
    %10 = vsyncpa [#allocation4], 0
    // Predicated region
    $region2: #{aspp_forward.3} parent=1 // pred_check
      _
    $region3: #{aspp_forward.3} parent=1 // pred_check_branch
      %12 = sbr.rel (0) target = $region5
    $region4: #{aspp_forward.3} parent=1 // pred_region
      %s14 = ssub.s32 4096, 4096
      %15 = vsyncadd [#allocation3], %s14
      %s16 = sshll.u32 [#allocation2], 4
      %s17 = int_to_ptr.vmem [resolvable:$true] %s16
      %22 = dma.hbm_to_vmem [thread:$0]  %s0, 4096, %s17, [#allocation3], 64, 64, 4
    $region5: #{aspp_forward.3} parent=1 // pred_fallthru
      _
    // Predicated region
    $region6: #{aspp_forward.3} parent=1 // pred_check
      _
    $region7: #{aspp_forward.3} parent=1 // pred_check_branch
      %24 = sbr.rel (0) target = $region9
    $region8: #{aspp_forward.3} parent=1 // pred_region
      %s26 = ssub.s32 16, 16
      %27 = vsyncadd [#allocation6], %s26
      %s29 = sshll.u32 [#allocation5], 4
      %s30 = int_to_ptr.vmem [resolvable:$true] %s29
      %32 = dma.hbm_to_vmem [thread:$0]  %s1, 16, %s30, [#allocation6]
    $region9: #{aspp_forward.3} parent=1 // pred_fallthru
      _
    // Predicated region
    $region10: #{aspp_forward.3} parent=1 // pred_check
      _
    $region11: #{aspp_forward.3} parent=1 // pred_check_branch
      %34 = sbr.rel (0) target = $region13
    $region12: #{aspp_forward.3} parent=1 // pred_region
      %s36 = ssub.s32 16, 16
      %37 = vsyncadd [#allocation6], %s36
      %s39 = sshll.u32 [#allocation7], 4
      %s40 = int_to_ptr.vmem [resolvable:$true] %s39
      %42 = dma.hbm_to_vmem [thread:$0]  %s2, 16, %s40, [#allocation6]
    $region13: #{aspp_forward.3} parent=1 // pred_fallthru
      _
    // Predicated region
    $region14: #{aspp_forward.3} parent=1 // pred_check
      _
    $region15: #{aspp_forward.3} parent=1 // pred_check_branch
      %44 = sbr.rel (0) target = $region17
    $region16: #{aspp_forward.3} parent=1 // pred_region
      %45 = dma.done [#allocation3], 4096
    $region17: #{aspp_forward.3} parent=1 // pred_fallthru
      _
    // Predicated region
    $region18: #{aspp_forward.3} parent=1 // pred_check
      _
    $region19: #{aspp_forward.3} parent=1 // pred_check_branch
      %47 = sbr.rel (0) target = $region21
    $region20: #{aspp_forward.3} parent=1 // pred_region
      %48 = dma.done [#allocation6], 16
    $region21: #{aspp_forward.3} parent=1 // pred_fallthru
      _
    // Predicated region
    $region22: #{aspp_forward.3} parent=1 // pred_check
      _
    $region23: #{aspp_forward.3} parent=1 // pred_check_branch
      %50 = sbr.rel (0) target = $region25
    $region24: #{aspp_forward.3} parent=1 // pred_region
      %51 = dma.done [#allocation6], 16
    $region25: #{aspp_forward.3} parent=1 // pred_fallthru
      _
    %v52 = vld [vmem:[#allocation2] sm:$0xf]
    %v53 = vld [vmem:[#allocation2 + $0x4] sm:$0xf]
    %v54 = vld [vmem:[#allocation2 + $0x8] sm:$0xf]
    %v55 = vld [vmem:[#allocation2 + $0xc] sm:$0xf]
    %v56 = vld [vmem:[#allocation2 + $0x10] sm:$0xf]
    %v57 = vld [vmem:[#allocation2 + $0x14] sm:$0xf]
    %v58 = vld [vmem:[#allocation2 + $0x18] sm:$0xf]
    %v59 = vld [vmem:[#allocation2 + $0x1c] sm:$0xf]
    %v60 = vld [vmem:[#allocation2 + $0x20] sm:$0xf]
    %v61 = vld [vmem:[#allocation2 + $0x24] sm:$0xf]
    %v62 = vld [vmem:[#allocation2 + $0x28] sm:$0xf]
    %v63 = vld [vmem:[#allocation2 + $0x2c] sm:$0xf]
    %v64 = vld [vmem:[#allocation2 + $0x30] sm:$0xf]
    %v65 = vld [vmem:[#allocation2 + $0x34] sm:$0xf]
    %v66 = vld [vmem:[#allocation2 + $0x38] sm:$0xf]
    %v67 = vld [vmem:[#allocation2 + $0x3c] sm:$0xf]
    %v68 = vld [vmem:[#allocation2 + $0x40] sm:$0xf]
    %v69 = vld [vmem:[#allocation2 + $0x44] sm:$0xf]
    %v70 = vld [vmem:[#allocation2 + $0x48] sm:$0xf]
    %v71 = vld [vmem:[#allocation2 + $0x4c] sm:$0xf]
    %v72 = vld [vmem:[#allocation2 + $0x50] sm:$0xf]
    %v73 = vld [vmem:[#allocation2 + $0x54] sm:$0xf]
    %v74 = vld [vmem:[#allocation2 + $0x58] sm:$0xf]
    %v75 = vld [vmem:[#allocation2 + $0x5c] sm:$0xf]
    %v76 = vld [vmem:[#allocation2 + $0x60] sm:$0xf]
    %v77 = vld [vmem:[#allocation2 + $0x64] sm:$0xf]
    %v78 = vld [vmem:[#allocation2 + $0x68] sm:$0xf]
    %v79 = vld [vmem:[#allocation2 + $0x6c] sm:$0xf]
    %v80 = vld [vmem:[#allocation2 + $0x70] sm:$0xf]
    %v81 = vld [vmem:[#allocation2 + $0x74] sm:$0xf]
    %v82 = vld [vmem:[#allocation2 + $0x78] sm:$0xf]
    %v83 = vld [vmem:[#allocation2 + $0x7c] sm:$0xf]
    %v84 = vld [vmem:[#allocation2 + $0x80] sm:$0xf]
    %v85 = vld [vmem:[#allocation2 + $0x84] sm:$0xf]
    %v86 = vld [vmem:[#allocation2 + $0x88] sm:$0xf]
    %v87 = vld [vmem:[#allocation2 + $0x8c] sm:$0xf]
    %v88 = vld [vmem:[#allocation2 + $0x90] sm:$0xf]
    %v89 = vld [vmem:[#allocation2 + $0x94] sm:$0xf]
    %v90 = vld [vmem:[#allocation2 + $0x98] sm:$0xf]
    %v91 = vld [vmem:[#allocation2 + $0x9c] sm:$0xf]
    %v92 = vld [vmem:[#allocation2 + $0xa0] sm:$0xf]
    %v93 = vld [vmem:[#allocation2 + $0xa4] sm:$0xf]
    %v94 = vld [vmem:[#allocation2 + $0xa8] sm:$0xf]
    %v95 = vld [vmem:[#allocation2 + $0xac] sm:$0xf]
    %v96 = vld [vmem:[#allocation2 + $0xb0] sm:$0xf]
    %v97 = vld [vmem:[#allocation2 + $0xb4] sm:$0xf]
    %v98 = vld [vmem:[#allocation2 + $0xb8] sm:$0xf]
    %v99 = vld [vmem:[#allocation2 + $0xbc] sm:$0xf]
    %v100 = vld [vmem:[#allocation2 + $0xc0] sm:$0xf]
    %v101 = vld [vmem:[#allocation2 + $0xc4] sm:$0xf]
    %v102 = vld [vmem:[#allocation2 + $0xc8] sm:$0xf]
    %v103 = vld [vmem:[#allocation2 + $0xcc] sm:$0xf]
    %v104 = vld [vmem:[#allocation2 + $0xd0] sm:$0xf]
    %v105 = vld [vmem:[#allocation2 + $0xd4] sm:$0xf]
    %v106 = vld [vmem:[#allocation2 + $0xd8] sm:$0xf]
    %v107 = vld [vmem:[#allocation2 + $0xdc] sm:$0xf]
    %v108 = vld [vmem:[#allocation2 + $0xe0] sm:$0xf]
    %v109 = vld [vmem:[#allocation2 + $0xe4] sm:$0xf]
    %v110 = vld [vmem:[#allocation2 + $0xe8] sm:$0xf]
    %v111 = vld [vmem:[#allocation2 + $0xec] sm:$0xf]
    %v112 = vld [vmem:[#allocation2 + $0xf0] sm:$0xf]
    %v113 = vld [vmem:[#allocation2 + $0xf4] sm:$0xf]
    %v114 = vld [vmem:[#allocation2 + $0xf8] sm:$0xf]
    %v115 = vld [vmem:[#allocation2 + $0xfc] sm:$0xf]
    %v116 = vunpack.c.l.bf16 %v52
    %v117 = vunpack.c.l.bf16 %v53
    %v118 = vunpack.c.l.bf16 %v54
    %v119 = vunpack.c.l.bf16 %v55
    %v120 = vunpack.c.l.bf16 %v56
    %v121 = vunpack.c.l.bf16 %v57
    %v122 = vunpack.c.l.bf16 %v58
    %v123 = vunpack.c.l.bf16 %v59
    %v124 = vunpack.c.l.bf16 %v60
    %v125 = vunpack.c.l.bf16 %v61
    %v126 = vunpack.c.l.bf16 %v62
    %v127 = vunpack.c.l.bf16 %v63
    %v128 = vunpack.c.l.bf16 %v64
    %v129 = vunpack.c.l.bf16 %v65
    %v130 = vunpack.c.l.bf16 %v66
    %v131 = vunpack.c.l.bf16 %v67
    %v132 = vunpack.c.l.bf16 %v68
    %v133 = vunpack.c.l.bf16 %v69
    %v134 = vunpack.c.l.bf16 %v70
    %v135 = vunpack.c.l.bf16 %v71
    %v136 = vunpack.c.l.bf16 %v72
    %v137 = vunpack.c.l.bf16 %v73
    %v138 = vunpack.c.l.bf16 %v74
    %v139 = vunpack.c.l.bf16 %v75
    %v140 = vunpack.c.l.bf16 %v76
    %v141 = vunpack.c.l.bf16 %v77
    %v142 = vunpack.c.l.bf16 %v78
    %v143 = vunpack.c.l.bf16 %v79
    %v144 = vunpack.c.l.bf16 %v80
    %v145 = vunpack.c.l.bf16 %v81
    %v146 = vunpack.c.l.bf16 %v82
    %v147 = vunpack.c.l.bf16 %v83
    %v148 = vunpack.c.l.bf16 %v84
    %v149 = vunpack.c.l.bf16 %v85
    %v150 = vunpack.c.l.bf16 %v86
    %v151 = vunpack.c.l.bf16 %v87
    %v152 = vunpack.c.l.bf16 %v88
    %v153 = vunpack.c.l.bf16 %v89
    %v154 = vunpack.c.l.bf16 %v90
    %v155 = vunpack.c.l.bf16 %v91
    %v156 = vunpack.c.l.bf16 %v92
    %v157 = vunpack.c.l.bf16 %v93
    %v158 = vunpack.c.l.bf16 %v94
    %v159 = vunpack.c.l.bf16 %v95
    %v160 = vunpack.c.l.bf16 %v96
    %v161 = vunpack.c.l.bf16 %v97
    %v162 = vunpack.c.l.bf16 %v98
    %v163 = vunpack.c.l.bf16 %v99
    %v164 = vunpack.c.l.bf16 %v100
    %v165 = vunpack.c.l.bf16 %v101
    %v166 = vunpack.c.l.bf16 %v102
    %v167 = vunpack.c.l.bf16 %v103
    %v168 = vunpack.c.l.bf16 %v104
    %v169 = vunpack.c.l.bf16 %v105
    %v170 = vunpack.c.l.bf16 %v106
    %v171 = vunpack.c.l.bf16 %v107
    %v172 = vunpack.c.l.bf16 %v108
    %v173 = vunpack.c.l.bf16 %v109
    %v174 = vunpack.c.l.bf16 %v110
    %v175 = vunpack.c.l.bf16 %v111
    %v176 = vunpack.c.l.bf16 %v112
    %v177 = vunpack.c.l.bf16 %v113
    %v178 = vunpack.c.l.bf16 %v114
    %v179 = vunpack.c.l.bf16 %v115
    %v180 = vld [vmem:[#allocation5] sm:$0x1]
    %v182 = vlaneseq
    %v183 = vshrl.u32 %v182, 7
    %v184 = vsub.s32 0, %v183
    %v185 = vrot.slane %v180, %v184
    %v187 = vmul.f32 %v116, %v185
    %v188 = vmul.f32 %v117, %v185
    %v189 = vmul.f32 %v118, %v185
    %v190 = vmul.f32 %v119, %v185
    %v191 = vmul.f32 %v120, %v185
    %v192 = vmul.f32 %v121, %v185
    %v193 = vmul.f32 %v122, %v185
    %v194 = vmul.f32 %v123, %v185
    %v195 = vmul.f32 %v124, %v185
    %v196 = vmul.f32 %v125, %v185
    %v197 = vmul.f32 %v126, %v185
    %v198 = vmul.f32 %v127, %v185
    %v199 = vmul.f32 %v128, %v185
    %v200 = vmul.f32 %v129, %v185
    %v201 = vmul.f32 %v130, %v185
    %v202 = vmul.f32 %v131, %v185
    %v203 = vmul.f32 %v132, %v185
    %v204 = vmul.f32 %v133, %v185
    %v205 = vmul.f32 %v134, %v185
    %v206 = vmul.f32 %v135, %v185
    %v207 = vmul.f32 %v136, %v185
    %v208 = vmul.f32 %v137, %v185
    %v209 = vmul.f32 %v138, %v185
    %v210 = vmul.f32 %v139, %v185
    %v211 = vmul.f32 %v140, %v185
    %v212 = vmul.f32 %v141, %v185
    %v213 = vmul.f32 %v142, %v185
    %v214 = vmul.f32 %v143, %v185
    %v215 = vmul.f32 %v144, %v185
    %v216 = vmul.f32 %v145, %v185
    %v217 = vmul.f32 %v146, %v185
    %v218 = vmul.f32 %v147, %v185
    %v219 = vmul.f32 %v148, %v185
    %v220 = vmul.f32 %v149, %v185
    %v221 = vmul.f32 %v150, %v185
    %v222 = vmul.f32 %v151, %v185
    %v223 = vmul.f32 %v152, %v185
    %v224 = vmul.f32 %v153, %v185
    %v225 = vmul.f32 %v154, %v185
    %v226 = vmul.f32 %v155, %v185
    %v227 = vmul.f32 %v156, %v185
    %v228 = vmul.f32 %v157, %v185
    %v229 = vmul.f32 %v158, %v185
    %v230 = vmul.f32 %v159, %v185
    %v231 = vmul.f32 %v160, %v185
    %v232 = vmul.f32 %v161, %v185
    %v233 = vmul.f32 %v162, %v185
    %v234 = vmul.f32 %v163, %v185
    %v235 = vmul.f32 %v164, %v185
    %v236 = vmul.f32 %v165, %v185
    %v237 = vmul.f32 %v166, %v185
    %v238 = vmul.f32 %v167, %v185
    %v239 = vmul.f32 %v168, %v185
    %v240 = vmul.f32 %v169, %v185
    %v241 = vmul.f32 %v170, %v185
    %v242 = vmul.f32 %v171, %v185
    %v243 = vmul.f32 %v172, %v185
    %v244 = vmul.f32 %v173, %v185
    %v245 = vmul.f32 %v174, %v185
    %v246 = vmul.f32 %v175, %v185
    %v247 = vmul.f32 %v176, %v185
    %v248 = vmul.f32 %v177, %v185
    %v249 = vmul.f32 %v178, %v185
    %v250 = vmul.f32 %v179, %v185
    %v251 = vld [vmem:[#allocation7] sm:$0x1]
    %v253 = vlaneseq
    %v254 = vshrl.u32 %v253, 7
    %v255 = vsub.s32 0, %v254
    %v256 = vrot.slane %v251, %v255
    %v258 = vadd.f32 %v187, %v256
    %v259 = vadd.f32 %v188, %v256
    %v260 = vadd.f32 %v189, %v256
    %v261 = vadd.f32 %v190, %v256
    %v262 = vadd.f32 %v191, %v256
    %v263 = vadd.f32 %v192, %v256
    %v264 = vadd.f32 %v193, %v256
    %v265 = vadd.f32 %v194, %v256
    %v266 = vadd.f32 %v195, %v256
    %v267 = vadd.f32 %v196, %v256
    %v268 = vadd.f32 %v197, %v256
    %v269 = vadd.f32 %v198, %v256
    %v270 = vadd.f32 %v199, %v256
    %v271 = vadd.f32 %v200, %v256
    %v272 = vadd.f32 %v201, %v256
    %v273 = vadd.f32 %v202, %v256
    %v274 = vadd.f32 %v203, %v256
    %v275 = vadd.f32 %v204, %v256
    %v276 = vadd.f32 %v205, %v256
    %v277 = vadd.f32 %v206, %v256
    %v278 = vadd.f32 %v207, %v256
    %v279 = vadd.f32 %v208, %v256
    %v280 = vadd.f32 %v209, %v256
    %v281 = vadd.f32 %v210, %v256
    %v282 = vadd.f32 %v211, %v256
    %v283 = vadd.f32 %v212, %v256
    %v284 = vadd.f32 %v213, %v256
    %v285 = vadd.f32 %v214, %v256
    %v286 = vadd.f32 %v215, %v256
    %v287 = vadd.f32 %v216, %v256
    %v288 = vadd.f32 %v217, %v256
    %v289 = vadd.f32 %v218, %v256
    %v290 = vadd.f32 %v219, %v256
    %v291 = vadd.f32 %v220, %v256
    %v292 = vadd.f32 %v221, %v256
    %v293 = vadd.f32 %v222, %v256
    %v294 = vadd.f32 %v223, %v256
    %v295 = vadd.f32 %v224, %v256
    %v296 = vadd.f32 %v225, %v256
    %v297 = vadd.f32 %v226, %v256
    %v298 = vadd.f32 %v227, %v256
    %v299 = vadd.f32 %v228, %v256
    %v300 = vadd.f32 %v229, %v256
    %v301 = vadd.f32 %v230, %v256
    %v302 = vadd.f32 %v231, %v256
    %v303 = vadd.f32 %v232, %v256
    %v304 = vadd.f32 %v233, %v256
    %v305 = vadd.f32 %v234, %v256
    %v306 = vadd.f32 %v235, %v256
    %v307 = vadd.f32 %v236, %v256
    %v308 = vadd.f32 %v237, %v256
    %v309 = vadd.f32 %v238, %v256
    %v310 = vadd.f32 %v239, %v256
    %v311 = vadd.f32 %v240, %v256
    %v312 = vadd.f32 %v241, %v256
    %v313 = vadd.f32 %v242, %v256
    %v314 = vadd.f32 %v243, %v256
    %v315 = vadd.f32 %v244, %v256
    %v316 = vadd.f32 %v245, %v256
    %v317 = vadd.f32 %v246, %v256
    %v318 = vadd.f32 %v247, %v256
    %v319 = vadd.f32 %v248, %v256
    %v320 = vadd.f32 %v249, %v256
    %v321 = vadd.f32 %v250, %v256
    %v322 = vmax.f32 %v258, 0.0
    %v323 = vmax.f32 %v259, 0.0
    %v324 = vmax.f32 %v260, 0.0
    %v325 = vmax.f32 %v261, 0.0
    %v326 = vmax.f32 %v262, 0.0
    %v327 = vmax.f32 %v263, 0.0
    %v328 = vmax.f32 %v264, 0.0
    %v329 = vmax.f32 %v265, 0.0
    %v330 = vmax.f32 %v266, 0.0
    %v331 = vmax.f32 %v267, 0.0
    %v332 = vmax.f32 %v268, 0.0
    %v333 = vmax.f32 %v269, 0.0
    %v334 = vmax.f32 %v270, 0.0
    %v335 = vmax.f32 %v271, 0.0
    %v336 = vmax.f32 %v272, 0.0
    %v337 = vmax.f32 %v273, 0.0
    %v338 = vmax.f32 %v274, 0.0
    %v339 = vmax.f32 %v275, 0.0
    %v340 = vmax.f32 %v276, 0.0
    %v341 = vmax.f32 %v277, 0.0
    %v342 = vmax.f32 %v278, 0.0
    %v343 = vmax.f32 %v279, 0.0
    %v344 = vmax.f32 %v280, 0.0
    %v345 = vmax.f32 %v281, 0.0
    %v346 = vmax.f32 %v282, 0.0
    %v347 = vmax.f32 %v283, 0.0
    %v348 = vmax.f32 %v284, 0.0
    %v349 = vmax.f32 %v285, 0.0
    %v350 = vmax.f32 %v286, 0.0
    %v351 = vmax.f32 %v287, 0.0
    %v352 = vmax.f32 %v288, 0.0
    %v353 = vmax.f32 %v289, 0.0
    %v354 = vmax.f32 %v290, 0.0
    %v355 = vmax.f32 %v291, 0.0
    %v356 = vmax.f32 %v292, 0.0
    %v357 = vmax.f32 %v293, 0.0
    %v358 = vmax.f32 %v294, 0.0
    %v359 = vmax.f32 %v295, 0.0
    %v360 = vmax.f32 %v296, 0.0
    %v361 = vmax.f32 %v297, 0.0
    %v362 = vmax.f32 %v298, 0.0
    %v363 = vmax.f32 %v299, 0.0
    %v364 = vmax.f32 %v300, 0.0
    %v365 = vmax.f32 %v301, 0.0
    %v366 = vmax.f32 %v302, 0.0
    %v367 = vmax.f32 %v303, 0.0
    %v368 = vmax.f32 %v304, 0.0
    %v369 = vmax.f32 %v305, 0.0
    %v370 = vmax.f32 %v306, 0.0
    %v371 = vmax.f32 %v307, 0.0
    %v372 = vmax.f32 %v308, 0.0
    %v373 = vmax.f32 %v309, 0.0
    %v374 = vmax.f32 %v310, 0.0
    %v375 = vmax.f32 %v311, 0.0
    %v376 = vmax.f32 %v312, 0.0
    %v377 = vmax.f32 %v313, 0.0
    %v378 = vmax.f32 %v314, 0.0
    %v379 = vmax.f32 %v315, 0.0
    %v380 = vmax.f32 %v316, 0.0
    %v381 = vmax.f32 %v317, 0.0
    %v382 = vmax.f32 %v318, 0.0
    %v383 = vmax.f32 %v319, 0.0
    %v384 = vmax.f32 %v320, 0.0
    %v385 = vmax.f32 %v321, 0.0
    %v386 = vpack.c.bf16 %v323, %v322
    %v387 = vpack.c.bf16 %v325, %v324
    %v388 = vpack.c.bf16 %v327, %v326
    %v389 = vpack.c.bf16 %v329, %v328
    %v390 = vpack.c.bf16 %v331, %v330
    %v391 = vpack.c.bf16 %v333, %v332
    %v392 = vpack.c.bf16 %v335, %v334
    %v393 = vpack.c.bf16 %v337, %v336
    %v394 = vpack.c.bf16 %v339, %v338
    %v395 = vpack.c.bf16 %v341, %v340
    %v396 = vpack.c.bf16 %v343, %v342
    %v397 = vpack.c.bf16 %v345, %v344
    %v398 = vpack.c.bf16 %v347, %v346
    %v399 = vpack.c.bf16 %v349, %v348
    %v400 = vpack.c.bf16 %v351, %v350
    %v401 = vpack.c.bf16 %v353, %v352
    %v402 = vpack.c.bf16 %v355, %v354
    %v403 = vpack.c.bf16 %v357, %v356
    %v404 = vpack.c.bf16 %v359, %v358
    %v405 = vpack.c.bf16 %v361, %v360
    %v406 = vpack.c.bf16 %v363, %v362
    %v407 = vpack.c.bf16 %v365, %v364
    %v408 = vpack.c.bf16 %v367, %v366
    %v409 = vpack.c.bf16 %v369, %v368
    %v410 = vpack.c.bf16 %v371, %v370
    %v411 = vpack.c.bf16 %v373, %v372
    %v412 = vpack.c.bf16 %v375, %v374
    %v413 = vpack.c.bf16 %v377, %v376
    %v414 = vpack.c.bf16 %v379, %v378
    %v415 = vpack.c.bf16 %v381, %v380
    %v416 = vpack.c.bf16 %v383, %v382
    %v417 = vpack.c.bf16 %v385, %v384
    %v450 = vunpack.c.l.b16 %v386
    %v451 = vunpack.c.h.b16 %v386
    %v452 = vunpack.c.l.b16 %v387
    %v453 = vunpack.c.h.b16 %v387
    %v454 = vunpack.c.l.b16 %v388
    %v455 = vunpack.c.h.b16 %v388
    %v456 = vunpack.c.l.b16 %v389
    %v457 = vunpack.c.h.b16 %v389
    %v458 = vunpack.c.l.b16 %v390
    %v459 = vunpack.c.h.b16 %v390
    %v460 = vunpack.c.l.b16 %v391
    %v461 = vunpack.c.h.b16 %v391
    %v462 = vunpack.c.l.b16 %v392
    %v463 = vunpack.c.h.b16 %v392
    %v464 = vunpack.c.l.b16 %v393
    %v465 = vunpack.c.h.b16 %v393
    %v466 = vunpack.c.l.b16 %v394
    %v467 = vunpack.c.h.b16 %v394
    %v468 = vunpack.c.l.b16 %v395
    %v469 = vunpack.c.h.b16 %v395
    %v470 = vunpack.c.l.b16 %v396
    %v471 = vunpack.c.h.b16 %v396
    %v472 = vunpack.c.l.b16 %v397
    %v473 = vunpack.c.h.b16 %v397
    %v474 = vunpack.c.l.b16 %v398
    %v475 = vunpack.c.h.b16 %v398
    %v476 = vunpack.c.l.b16 %v399
    %v477 = vunpack.c.h.b16 %v399
    %v478 = vunpack.c.l.b16 %v400
    %v479 = vunpack.c.h.b16 %v400
    %v480 = vunpack.c.l.b16 %v401
    %v481 = vunpack.c.h.b16 %v401
    %v482 = vunpack.c.l.b16 %v402
    %v483 = vunpack.c.h.b16 %v402
    %v484 = vunpack.c.l.b16 %v403
    %v485 = vunpack.c.h.b16 %v403
    %v486 = vunpack.c.l.b16 %v404
    %v487 = vunpack.c.h.b16 %v404
    %v488 = vunpack.c.l.b16 %v405
    %v489 = vunpack.c.h.b16 %v405
    %v490 = vunpack.c.l.b16 %v406
    %v491 = vunpack.c.h.b16 %v406
    %v492 = vunpack.c.l.b16 %v407
    %v493 = vunpack.c.h.b16 %v407
    %v494 = vunpack.c.l.b16 %v408
    %v495 = vunpack.c.h.b16 %v408
    %v496 = vunpack.c.l.b16 %v409
    %v497 = vunpack.c.h.b16 %v409
    %v498 = vunpack.c.l.b16 %v410
    %v499 = vunpack.c.h.b16 %v410
    %v500 = vunpack.c.l.b16 %v411
    %v501 = vunpack.c.h.b16 %v411
    %v502 = vunpack.c.l.b16 %v412
    %v503 = vunpack.c.h.b16 %v412
    %v504 = vunpack.c.l.b16 %v413
    %v505 = vunpack.c.h.b16 %v413
    %v506 = vunpack.c.l.b16 %v414
    %v507 = vunpack.c.h.b16 %v414
    %v508 = vunpack.c.l.b16 %v415
    %v509 = vunpack.c.h.b16 %v415
    %v510 = vunpack.c.l.b16 %v416
    %v511 = vunpack.c.h.b16 %v416
    %v512 = vunpack.c.l.b16 %v417
    %v513 = vunpack.c.h.b16 %v417
    %v514 = vpack.c.b16 %v450, %v450
    %v515 = vpack.c.b16 %v451, %v451
    %v516 = vpack.c.b16 %v452, %v452
    %v517 = vpack.c.b16 %v453, %v453
    %v518 = vpack.c.b16 %v454, %v454
    %v519 = vpack.c.b16 %v455, %v455
    %v520 = vpack.c.b16 %v456, %v456
    %v521 = vpack.c.b16 %v457, %v457
    %v522 = vpack.c.b16 %v458, %v458
    %v523 = vpack.c.b16 %v459, %v459
    %v524 = vpack.c.b16 %v460, %v460
    %v525 = vpack.c.b16 %v461, %v461
    %v526 = vpack.c.b16 %v462, %v462
    %v527 = vpack.c.b16 %v463, %v463
    %v528 = vpack.c.b16 %v464, %v464
    %v529 = vpack.c.b16 %v465, %v465
    %v530 = vpack.c.b16 %v466, %v466
    %v531 = vpack.c.b16 %v467, %v467
    %v532 = vpack.c.b16 %v468, %v468
    %v533 = vpack.c.b16 %v469, %v469
    %v534 = vpack.c.b16 %v470, %v470
    %v535 = vpack.c.b16 %v471, %v471
    %v536 = vpack.c.b16 %v472, %v472
    %v537 = vpack.c.b16 %v473, %v473
    %v538 = vpack.c.b16 %v474, %v474
    %v539 = vpack.c.b16 %v475, %v475
    %v540 = vpack.c.b16 %v476, %v476
    %v541 = vpack.c.b16 %v477, %v477
    %v542 = vpack.c.b16 %v478, %v478
    %v543 = vpack.c.b16 %v479, %v479
    %v544 = vpack.c.b16 %v480, %v480
    %v545 = vpack.c.b16 %v481, %v481
    %v546 = vpack.c.b16 %v482, %v482
    %v547 = vpack.c.b16 %v483, %v483
    %v548 = vpack.c.b16 %v484, %v484
    %v549 = vpack.c.b16 %v485, %v485
    %v550 = vpack.c.b16 %v486, %v486
    %v551 = vpack.c.b16 %v487, %v487
    %v552 = vpack.c.b16 %v488, %v488
    %v553 = vpack.c.b16 %v489, %v489
    %v554 = vpack.c.b16 %v490, %v490
    %v555 = vpack.c.b16 %v491, %v491
    %v556 = vpack.c.b16 %v492, %v492
    %v557 = vpack.c.b16 %v493, %v493
    %v558 = vpack.c.b16 %v494, %v494
    %v559 = vpack.c.b16 %v495, %v495
    %v560 = vpack.c.b16 %v496, %v496
    %v561 = vpack.c.b16 %v497, %v497
    %v562 = vpack.c.b16 %v498, %v498
    %v563 = vpack.c.b16 %v499, %v499
    %v564 = vpack.c.b16 %v500, %v500
    %v565 = vpack.c.b16 %v501, %v501
    %v566 = vpack.c.b16 %v502, %v502
    %v567 = vpack.c.b16 %v503, %v503
    %v568 = vpack.c.b16 %v504, %v504
    %v569 = vpack.c.b16 %v505, %v505
    %v570 = vpack.c.b16 %v506, %v506
    %v571 = vpack.c.b16 %v507, %v507
    %v572 = vpack.c.b16 %v508, %v508
    %v573 = vpack.c.b16 %v509, %v509
    %v574 = vpack.c.b16 %v510, %v510
    %v575 = vpack.c.b16 %v511, %v511
    %v576 = vpack.c.b16 %v512, %v512
    %v577 = vpack.c.b16 %v513, %v513
    %642 = vst [vmem:[#allocation8] sm:$0xf] %v514
    %643 = vst [vmem:[#allocation8 + $0x4] sm:$0xf] %v515
    %644 = vst [vmem:[#allocation8 + $0x8] sm:$0xf] %v516
    %645 = vst [vmem:[#allocation8 + $0xc] sm:$0xf] %v517
    %646 = vst [vmem:[#allocation8 + $0x10] sm:$0xf] %v518
    %647 = vst [vmem:[#allocation8 + $0x14] sm:$0xf] %v519
    %648 = vst [vmem:[#allocation8 + $0x18] sm:$0xf] %v520
    %649 = vst [vmem:[#allocation8 + $0x1c] sm:$0xf] %v521
    %650 = vst [vmem:[#allocation8 + $0x20] sm:$0xf] %v522
    %651 = vst [vmem:[#allocation8 + $0x24] sm:$0xf] %v523
    %652 = vst [vmem:[#allocation8 + $0x28] sm:$0xf] %v524
    %653 = vst [vmem:[#allocation8 + $0x2c] sm:$0xf] %v525
    %654 = vst [vmem:[#allocation8 + $0x30] sm:$0xf] %v526
    %655 = vst [vmem:[#allocation8 + $0x34] sm:$0xf] %v527
    %656 = vst [vmem:[#allocation8 + $0x38] sm:$0xf] %v528
    %657 = vst [vmem:[#allocation8 + $0x3c] sm:$0xf] %v529
    %658 = vst [vmem:[#allocation8 + $0x40] sm:$0xf] %v530
    %659 = vst [vmem:[#allocation8 + $0x44] sm:$0xf] %v531
    %660 = vst [vmem:[#allocation8 + $0x48] sm:$0xf] %v532
    %661 = vst [vmem:[#allocation8 + $0x4c] sm:$0xf] %v533
    %662 = vst [vmem:[#allocation8 + $0x50] sm:$0xf] %v534
    %663 = vst [vmem:[#allocation8 + $0x54] sm:$0xf] %v535
    %664 = vst [vmem:[#allocation8 + $0x58] sm:$0xf] %v536
    %665 = vst [vmem:[#allocation8 + $0x5c] sm:$0xf] %v537
    %666 = vst [vmem:[#allocation8 + $0x60] sm:$0xf] %v538
    %667 = vst [vmem:[#allocation8 + $0x64] sm:$0xf] %v539
    %668 = vst [vmem:[#allocation8 + $0x68] sm:$0xf] %v540
    %669 = vst [vmem:[#allocation8 + $0x6c] sm:$0xf] %v541
    %670 = vst [vmem:[#allocation8 + $0x70] sm:$0xf] %v542
    %671 = vst [vmem:[#allocation8 + $0x74] sm:$0xf] %v543
    %672 = vst [vmem:[#allocation8 + $0x78] sm:$0xf] %v544
    %673 = vst [vmem:[#allocation8 + $0x7c] sm:$0xf] %v545
    %674 = vst [vmem:[#allocation8 + $0x80] sm:$0xf] %v546
    %675 = vst [vmem:[#allocation8 + $0x84] sm:$0xf] %v547
    %676 = vst [vmem:[#allocation8 + $0x88] sm:$0xf] %v548
    %677 = vst [vmem:[#allocation8 + $0x8c] sm:$0xf] %v549
    %678 = vst [vmem:[#allocation8 + $0x90] sm:$0xf] %v550
    %679 = vst [vmem:[#allocation8 + $0x94] sm:$0xf] %v551
    %680 = vst [vmem:[#allocation8 + $0x98] sm:$0xf] %v552
    %681 = vst [vmem:[#allocation8 + $0x9c] sm:$0xf] %v553
    %682 = vst [vmem:[#allocation8 + $0xa0] sm:$0xf] %v554
    %683 = vst [vmem:[#allocation8 + $0xa4] sm:$0xf] %v555
    %684 = vst [vmem:[#allocation8 + $0xa8] sm:$0xf] %v556
    %685 = vst [vmem:[#allocation8 + $0xac] sm:$0xf] %v557
    %686 = vst [vmem:[#allocation8 + $0xb0] sm:$0xf] %v558
    %687 = vst [vmem:[#allocation8 + $0xb4] sm:$0xf] %v559
    %688 = vst [vmem:[#allocation8 + $0xb8] sm:$0xf] %v560
    %689 = vst [vmem:[#allocation8 + $0xbc] sm:$0xf] %v561
    %690 = vst [vmem:[#allocation8 + $0xc0] sm:$0xf] %v562
    %691 = vst [vmem:[#allocation8 + $0xc4] sm:$0xf] %v563
    %692 = vst [vmem:[#allocation8 + $0xc8] sm:$0xf] %v564
    %693 = vst [vmem:[#allocation8 + $0xcc] sm:$0xf] %v565
    %694 = vst [vmem:[#allocation8 + $0xd0] sm:$0xf] %v566
    %695 = vst [vmem:[#allocation8 + $0xd4] sm:$0xf] %v567
    %696 = vst [vmem:[#allocation8 + $0xd8] sm:$0xf] %v568
    %697 = vst [vmem:[#allocation8 + $0xdc] sm:$0xf] %v569
    %698 = vst [vmem:[#allocation8 + $0xe0] sm:$0xf] %v570
    %699 = vst [vmem:[#allocation8 + $0xe4] sm:$0xf] %v571
    %700 = vst [vmem:[#allocation8 + $0xe8] sm:$0xf] %v572
    %701 = vst [vmem:[#allocation8 + $0xec] sm:$0xf] %v573
    %702 = vst [vmem:[#allocation8 + $0xf0] sm:$0xf] %v574
    %703 = vst [vmem:[#allocation8 + $0xf4] sm:$0xf] %v575
    %704 = vst [vmem:[#allocation8 + $0xf8] sm:$0xf] %v576
    %705 = vst [vmem:[#allocation8 + $0xfc] sm:$0xf] %v577
    // Predicated region
    $region26: #{aspp_forward.3} parent=1 // pred_check
      _
    $region27: #{aspp_forward.3} parent=1 // pred_check_branch
      %707 = sbr.rel (0) target = $region29
    $region28: #{aspp_forward.3} parent=1 // pred_region
      %s709 = ssub.s32 4096, 4096
      %710 = vsyncadd [#allocation4], %s709
      %s711 = sshll.u32 [#allocation8], 4
      %s712 = int_to_ptr.vmem [resolvable:$true] %s711
      %717 = dma.vmem_to_hbm [thread:$0]  %s712, 4096, %s3, [#allocation4], 64, 64, 4
    $region29: #{aspp_forward.3} parent=1 // pred_fallthru
      _
    // Predicated region
    $region30: #{aspp_forward.3} parent=1 // pred_check
      _
    $region31: #{aspp_forward.3} parent=1 // pred_check_branch
      %719 = sbr.rel (0) target = $region33
    $region32: #{aspp_forward.3} parent=1 // pred_region
      %720 = dma.done [#allocation4], 4096
    $region33: #{aspp_forward.3} parent=1 // pred_fallthru
      _
    %721 = vsyncpa [#allocation3], 1
    %722 = vsyncpa [#allocation6], 1
    %723 = vsyncpa [#allocation4], 1

// kernel: aspp_forward.2
$region0: #{aspp_forward.2}
  #allocation0 [shape = 'u32[]', space=smem, size = 0x4, offset = 0x4, fixed_abs, tag = 'smem constant byte address 0x4 - core index']
  #allocation1 [shape = 'u32[144,128]{1,0:T(1,128)}', space=vmem, size = 0x12000, scoped, tag = 'internal scratch']
  %s0 = inlined_call_operand.hbm [shape: bf16[512,128], index: 0, kind: input, shape index: {}]
  %s1 = inlined_call_operand.hbm [shape: bf16[128,128], index: 1, kind: input, shape index: {}]
  %s2 = inlined_call_operand.hbm [shape: bf16[512,128], index: 2, kind: output, shape index: {0}]
  %s3 = inlined_call_operand.hbm [shape: f32[2,1,128], index: 3, kind: output, shape index: {1}]
  %s4 = inlined_call_operand.hbm [shape: f32[2,1,128], index: 4, kind: output, shape index: {2}]
  %5 = xla_tuple %s2, %s3, %s4
  %s6 = sld [smem:[#allocation0]]
  $region65: #{aspp_forward.2} parent=0
    _
  %s8 = ssub.s32 1, %s6
  %s9 = scalar_select 0, %s8, %s6
  $region1: #{aspp_forward.2} parent=0
    #allocation2 [shape = 'u8[131072]{0}', space=vmem, size = 0x20000, scoped, tag = 'input window, operand 0']
    #allocation3 [shape = 's32[2]{0}', space=sflag, size = 0x8, scoped, tag = 'scoped memory for aspp_forward.2']
    #allocation4 [shape = 's32[2]{0}', space=sflag, size = 0x8, scoped, tag = 'scoped memory for aspp_forward.2']
    #allocation5 [shape = 'u8[32768]{0}', space=vmem, size = 0x8000, scoped, tag = 'input window, operand 1, single buffered']
    #allocation6 [shape = 's32[1]{0}', space=sflag, size = 0x4, scoped, tag = 'scoped memory for aspp_forward.2']
    #allocation7 [shape = 'u8[131072]{0}', space=vmem, size = 0x20000, scoped, tag = 'output window, operand 0']
    #allocation8 [shape = 'u8[1024]{0}', space=vmem, size = 0x400, scoped, tag = 'output window, operand 1']
    #allocation9 [shape = 's32[2]{0}', space=sflag, size = 0x8, scoped, tag = 'scoped memory for aspp_forward.2']
    #allocation10 [shape = 'u8[1024]{0}', space=vmem, size = 0x400, scoped, tag = 'output window, operand 2']
    %10 = vsyncpa [#allocation3], 0
    %s11 = scalar_lea.sflag [#allocation3], 1
    %12 = vsyncpa %s11, 0
    %13 = vsyncpa [#allocation6], 0
    %14 = vsyncpa [#allocation4], 0
    %s15 = scalar_lea.sflag [#allocation4], 1
    %16 = vsyncpa %s15, 0
    %17 = vsyncpa [#allocation9], 0
    %s18 = scalar_lea.sflag [#allocation9], 1
    %19 = vsyncpa %s18, 0
    loop: start=0, step=1, limit=4
    $region2: #{aspp_forward.2} parent=1 // loop_pre_header
      _
    $region3: #{aspp_forward.2} parent=1 // loop_header
      %s21 = sphi 0, %s25
      %p22 = scmp.ge.s32.totalorder %s21, 4
      %s31 = sphi 0, %s33
      %s34 = sphi 0, %s31
      %s35 = sphi 0, %s34
      %s51 = sphi 0, %s35
      %s55 = sphi 0, %s55
      %s57 = sphi 0, %s55
      %s58 = sphi 0, %s57
      %s72 = sphi 0, %s58
      %s78 = sphi 0, %s80
      %s81 = sphi 0, %s78
      %s82 = sphi 0, %s81
      %s98 = sphi 0, %s82
      %s104 = sphi 0, %s106
      %s107 = sphi 0, %s104
      %s108 = sphi 0, %s107
      %s124 = sphi 0, %s108
      %s130 = sphi 0, %s132
      %s133 = sphi 0, %s130
      %s134 = sphi 0, %s133
      %s150 = sphi 0, %s134
    $region4: #{aspp_forward.2} parent=1 // loop_header_branch
      %24 = sbr.rel (%p22) target = $region8
    $region5: #{aspp_forward.2} parent=1 // loop_body
      %s26 = ssub.s32 %s21, 1
      %s27 = ssub.s32 %s21, 2
      %s28 = sadd.s32 %s21, 1
      %s29 = ssub.s32 %s21, %s28
      %p30 = scmp.eq.s32.totalorder %s29, 0
      %s32 = sadd.s32 %s31, 1
      %s33 = scalar_select %p30, %s31, %s32
      %p36 = pneg %p30
      %p37 = scmp.eq.s32.totalorder %s21, 1
      %p38 = por %p36, %p37
      %p39 = scmp.ne.s32.totalorder %s31, %s34
      %p40 = scmp.eq.s32.totalorder %s21, 0
      %p41 = por %p39, %p40
      %p42 = scmp.ne.s32.totalorder %s31, %s34
      %p43 = scmp.eq.s32.totalorder %s26, 1
      %p44 = por %p42, %p43
      %p45 = scmp.ne.s32.totalorder %s34, %s35
      %p46 = scmp.eq.s32.totalorder %s26, 0
      %p47 = por %p45, %p46
      %p48 = scmp.ne.s32.totalorder %s34, %s35
      %p49 = scmp.eq.s32.totalorder %s27, 1
      %p50 = por %p48, %p49
      %p52 = scmp.ne.s32.totalorder %s35, %s51
      %p53 = scmp.eq.s32.totalorder %s27, 0
      %p54 = por %p52, %p53
      %s56 = sadd.s32 %s55, 1
      %p59 = scmp.eq.s32.totalorder %s21, 1
      %p60 = scmp.ne.s32.totalorder %s55, %s57
      %p61 = scmp.eq.s32.totalorder %s21, 0
      %p62 = por %p60, %p61
      %p63 = scmp.ne.s32.totalorder %s55, %s57
      %p64 = scmp.eq.s32.totalorder %s26, 1
      %p65 = por %p63, %p64
      %p66 = scmp.ne.s32.totalorder %s57, %s58
      %p67 = scmp.eq.s32.totalorder %s26, 0
      %p68 = por %p66, %p67
      %p69 = scmp.ne.s32.totalorder %s57, %s58
      %p70 = scmp.eq.s32.totalorder %s27, 1
      %p71 = por %p69, %p70
      %p73 = scmp.ne.s32.totalorder %s58, %s72
      %p74 = scmp.eq.s32.totalorder %s27, 0
      %p75 = por %p73, %p74
      %s76 = ssub.s32 %s21, %s28
      %p77 = scmp.eq.s32.totalorder %s76, 0
      %s79 = sadd.s32 %s78, 1
      %s80 = scalar_select %p77, %s78, %s79
      %p83 = pneg %p77
      %p84 = scmp.eq.s32.totalorder %s21, 1
      %p85 = por %p83, %p84
      %p86 = scmp.ne.s32.totalorder %s78, %s81
      %p87 = scmp.eq.s32.totalorder %s21, 0
      %p88 = por %p86, %p87
      %p89 = scmp.ne.s32.totalorder %s78, %s81
      %p90 = scmp.eq.s32.totalorder %s26, 1
      %p91 = por %p89, %p90
      %p92 = scmp.ne.s32.totalorder %s81, %s82
      %p93 = scmp.eq.s32.totalorder %s26, 0
      %p94 = por %p92, %p93
      %p95 = scmp.ne.s32.totalorder %s81, %s82
      %p96 = scmp.eq.s32.totalorder %s27, 1
      %p97 = por %p95, %p96
      %p99 = scmp.ne.s32.totalorder %s82, %s98
      %p100 = scmp.eq.s32.totalorder %s27, 0
      %p101 = por %p99, %p100
      %s102 = ssub.s32 %s21, %s28
      %p103 = scmp.eq.s32.totalorder %s102, 0
      %s105 = sadd.s32 %s104, 1
      %s106 = scalar_select %p103, %s104, %s105
      %p109 = pneg %p103
      %p110 = scmp.eq.s32.totalorder %s21, 1
      %p111 = por %p109, %p110
      %p112 = scmp.ne.s32.totalorder %s104, %s107
      %p113 = scmp.eq.s32.totalorder %s21, 0
      %p114 = por %p112, %p113
      %p115 = scmp.ne.s32.totalorder %s104, %s107
      %p116 = scmp.eq.s32.totalorder %s26, 1
      %p117 = por %p115, %p116
      %p118 = scmp.ne.s32.totalorder %s107, %s108
      %p119 = scmp.eq.s32.totalorder %s26, 0
      %p120 = por %p118, %p119
      %p121 = scmp.ne.s32.totalorder %s107, %s108
      %p122 = scmp.eq.s32.totalorder %s27, 1
      %p123 = por %p121, %p122
      %p125 = scmp.ne.s32.totalorder %s108, %s124
      %p126 = scmp.eq.s32.totalorder %s27, 0
      %p127 = por %p125, %p126
      %s128 = ssub.s32 %s21, %s28
      %p129 = scmp.eq.s32.totalorder %s128, 0
      %s131 = sadd.s32 %s130, 1
      %s132 = scalar_select %p129, %s130, %s131
      %p135 = pneg %p129
      %p136 = scmp.eq.s32.totalorder %s21, 1
      %p137 = por %p135, %p136
      %p138 = scmp.ne.s32.totalorder %s130, %s133
      %p139 = scmp.eq.s32.totalorder %s21, 0
      %p140 = por %p138, %p139
      %p141 = scmp.ne.s32.totalorder %s130, %s133
      %p142 = scmp.eq.s32.totalorder %s26, 1
      %p143 = por %p141, %p142
      %p144 = scmp.ne.s32.totalorder %s133, %s134
      %p145 = scmp.eq.s32.totalorder %s26, 0
      %p146 = por %p144, %p145
      %p147 = scmp.ne.s32.totalorder %s133, %s134
      %p148 = scmp.eq.s32.totalorder %s27, 1
      %p149 = por %p147, %p148
      %p151 = scmp.ne.s32.totalorder %s134, %s150
      %p152 = scmp.eq.s32.totalorder %s27, 0
      %p153 = por %p151, %p152
      %p154 = scmp.le.s32.totalorder 1, %s21
      %p155 = scmp.lt.s32.totalorder %s21, 3
      %p156 = pnand %p154, %p155
      %p157 = pneg %p156
      // Predicated region
      $region9: #{aspp_forward.2} parent=5 // pred_check
        _
      $region10: #{aspp_forward.2} parent=5 // pred_check_branch
        %159 = sbr.rel (%p156) target = $region12
      $region11: #{aspp_forward.2} parent=5 // pred_region
        %s160 = ssub.s32 %s21, 1
        // Predicated region
        $region13: #{aspp_forward.2} parent=11 // pred_check
          %p161 = pneg %p68
        $region14: #{aspp_forward.2} parent=11 // pred_check_branch
          %163 = sbr.rel (%p161) target = $region16
        $region15: #{aspp_forward.2} parent=11 // pred_region
          %s165 = ssub.s32 1024, 1024
          %166 = vsyncadd [#allocation6], %s165
          %s167 = sshll.u32 [#allocation5], 4
          %s168 = int_to_ptr.vmem [resolvable:$true] %s167
          %173 = dma.hbm_to_vmem [thread:$0]  %s1, 1024, %s168, [#allocation6], 64, 64, 4
        $region16: #{aspp_forward.2} parent=11 // pred_fallthru
          _
      $region12: #{aspp_forward.2} parent=5 // pred_fallthru
        _
      %p174 = scmp.lt.s32.totalorder %s21, 2
      // Predicated region
      $region17: #{aspp_forward.2} parent=5 // pred_check
        %p175 = pneg %p174
      $region18: #{aspp_forward.2} parent=5 // pred_check_branch
        %177 = sbr.rel (%p175) target = $region20
      $region19: #{aspp_forward.2} parent=5 // pred_region
        // Predicated region
        $region21: #{aspp_forward.2} parent=19 // pred_check
          %p178 = pneg %p41
        $region22: #{aspp_forward.2} parent=19 // pred_check_branch
          %180 = sbr.rel (%p178) target = $region24
        $region23: #{aspp_forward.2} parent=19 // pred_region
          %s181 = sand.u32 %s31, 1
          %s182 = scalar_lea.sflag [#allocation3], %s181
          %s183 = sand.u32 %s31, 1
          %s184 = smul.addr %s183, 128
          %s185 = scalar_lea.vmem [#allocation2], %s184
          %s186 = smul.u32 32, %s21
          %s188 = ssub.s32 2048, 2048
          %189 = vsyncadd %s182, %s188
          %s190 = smul.addr %s186, 64
          %s191 = scalar_lea.hbm %s0, %s190
          %s192 = sshll.u32 %s185, 4
          %s193 = int_to_ptr.vmem [resolvable:$true] %s192
          %198 = dma.hbm_to_vmem [thread:$0]  %s191, 2048, %s193, %s182, 64, 64, 4
        $region24: #{aspp_forward.2} parent=19 // pred_fallthru
          _
      $region20: #{aspp_forward.2} parent=5 // pred_fallthru
        _
      %p199 = scmp.le.s32.totalorder 1, %s21
      %p200 = scmp.lt.s32.totalorder %s21, 3
      %p201 = pnand %p199, %p200
      %p202 = pneg %p201
      // Predicated region
      $region25: #{aspp_forward.2} parent=5 // pred_check
        _
      $region26: #{aspp_forward.2} parent=5 // pred_check_branch
        %204 = sbr.rel (%p201) target = $region28
      $region27: #{aspp_forward.2} parent=5 // pred_region
        %s205 = ssub.s32 %s21, 1
        %s206 = sand.u32 %s34, 1
        %s207 = scalar_lea.sflag [#allocation3], %s206
        %s208 = sand.u32 %s34, 1
        %s209 = smul.addr %s208, 128
        %s210 = scalar_lea.vmem [#allocation2], %s209
        // Predicated region
        $region29: #{aspp_forward.2} parent=27 // pred_check
          %p211 = pneg %p47
        $region30: #{aspp_forward.2} parent=27 // pred_check_branch
          %213 = sbr.rel (%p211) target = $region32
        $region31: #{aspp_forward.2} parent=27 // pred_region
          %214 = dma.done %s207, 2048
        $region32: #{aspp_forward.2} parent=27 // pred_fallthru
          _
        // Predicated region
        $region33: #{aspp_forward.2} parent=27 // pred_check
          %p215 = pneg %p68
        $region34: #{aspp_forward.2} parent=27 // pred_check_branch
          %217 = sbr.rel (%p215) target = $region36
        $region35: #{aspp_forward.2} parent=27 // pred_region
          %218 = dma.done [#allocation6], 1024
        $region36: #{aspp_forward.2} parent=27 // pred_fallthru
          _
        %s219 = sand.u32 %s34, 1
        %s220 = scalar_lea.sflag [#allocation3], %s219
        %s221 = sand.u32 %s34, 1
        %s222 = smul.addr %s221, 128
        %s223 = scalar_lea.vmem [#allocation2], %s222
        %p224 = pneg %p47
        %p225 = pneg %p44
        %p226 = pneg %p68
        %p227 = pneg %p65
        %p228 = pneg %p94
        %p229 = pneg %p91
        %s230 = sand.u32 %s81, 1
        %s231 = scalar_lea.sflag [#allocation4], %s230
        %s232 = sand.u32 %s81, 1
        %s233 = smul.addr %s232, 128
        %s234 = scalar_lea.vmem [#allocation7], %s233
        %p235 = pneg %p120
        %p236 = pneg %p117
        %s237 = sand.u32 %s26, 1
        %s238 = scalar_lea.sflag [#allocation9], %s237
        %s239 = sand.u32 %s107, 1
        %s240 = scalar_lea.vmem [#allocation8], %s239
        %p241 = pneg %p146
        %p242 = pneg %p143
        %s243 = sand.u32 %s26, 1
        %s244 = scalar_lea.sflag [#allocation9], %s243
        %s245 = sand.u32 %s133, 1
        %s246 = scalar_lea.vmem [#allocation10], %s245
        %s247 = smul.u32 32, %s26
        %s248 = smul.u32 32, %s26
        %v250 = vld [vmem:[%s210] sm:$0xf]
        %v251 = vld [vmem:[%s210 + $0x4] sm:$0xf]
        %v252 = vld [vmem:[%s210 + $0x8] sm:$0xf]
        %v253 = vld [vmem:[%s210 + $0xc] sm:$0xf]
        %v254 = vld [vmem:[%s210 + $0x10] sm:$0xf]
        %v255 = vld [vmem:[%s210 + $0x14] sm:$0xf]
        %v256 = vld [vmem:[%s210 + $0x18] sm:$0xf]
        %v257 = vld [vmem:[%s210 + $0x1c] sm:$0xf]
        %v258 = vld [vmem:[%s210 + $0x20] sm:$0xf]
        %v259 = vld [vmem:[%s210 + $0x24] sm:$0xf]
        %v260 = vld [vmem:[%s210 + $0x28] sm:$0xf]
        %v261 = vld [vmem:[%s210 + $0x2c] sm:$0xf]
        %v262 = vld [vmem:[%s210 + $0x30] sm:$0xf]
        %v263 = vld [vmem:[%s210 + $0x34] sm:$0xf]
        %v264 = vld [vmem:[%s210 + $0x38] sm:$0xf]
        %v265 = vld [vmem:[%s210 + $0x3c] sm:$0xf]
        %v266 = vld [vmem:[%s210 + $0x40] sm:$0xf]
        %v267 = vld [vmem:[%s210 + $0x44] sm:$0xf]
        %v268 = vld [vmem:[%s210 + $0x48] sm:$0xf]
        %v269 = vld [vmem:[%s210 + $0x4c] sm:$0xf]
        %v270 = vld [vmem:[%s210 + $0x50] sm:$0xf]
        %v271 = vld [vmem:[%s210 + $0x54] sm:$0xf]
        %v272 = vld [vmem:[%s210 + $0x58] sm:$0xf]
        %v273 = vld [vmem:[%s210 + $0x5c] sm:$0xf]
        %v274 = vld [vmem:[%s210 + $0x60] sm:$0xf]
        %v275 = vld [vmem:[%s210 + $0x64] sm:$0xf]
        %v276 = vld [vmem:[%s210 + $0x68] sm:$0xf]
        %v277 = vld [vmem:[%s210 + $0x6c] sm:$0xf]
        %v278 = vld [vmem:[%s210 + $0x70] sm:$0xf]
        %v279 = vld [vmem:[%s210 + $0x74] sm:$0xf]
        %v280 = vld [vmem:[%s210 + $0x78] sm:$0xf]
        %v281 = vld [vmem:[%s210 + $0x7c] sm:$0xf]
        %v282 = vld [vmem:[#allocation5] sm:$0xf]
        %v283 = vld [vmem:[#allocation5 + $0x4] sm:$0xf]
        %v284 = vld [vmem:[#allocation5 + $0x8] sm:$0xf]
        %v285 = vld [vmem:[#allocation5 + $0xc] sm:$0xf]
        %v286 = vld [vmem:[#allocation5 + $0x10] sm:$0xf]
        %v287 = vld [vmem:[#allocation5 + $0x14] sm:$0xf]
        %v288 = vld [vmem:[#allocation5 + $0x18] sm:$0xf]
        %v289 = vld [vmem:[#allocation5 + $0x1c] sm:$0xf]
        %v290 = vld [vmem:[#allocation5 + $0x20] sm:$0xf]
        %v291 = vld [vmem:[#allocation5 + $0x24] sm:$0xf]
        %v292 = vld [vmem:[#allocation5 + $0x28] sm:$0xf]
        %v293 = vld [vmem:[#allocation5 + $0x2c] sm:$0xf]
        %v294 = vld [vmem:[#allocation5 + $0x30] sm:$0xf]
        %v295 = vld [vmem:[#allocation5 + $0x34] sm:$0xf]
        %v296 = vld [vmem:[#allocation5 + $0x38] sm:$0xf]
        %v297 = vld [vmem:[#allocation5 + $0x3c] sm:$0xf]
        %v330 = vunpack.c.l.b16 %v250
        %v331 = vunpack.c.l.b16 %v251
        %v332 = vunpack.c.l.b16 %v252
        %v333 = vunpack.c.l.b16 %v253
        %v334 = vunpack.c.l.b16 %v254
        %v335 = vunpack.c.l.b16 %v255
        %v336 = vunpack.c.l.b16 %v256
        %v337 = vunpack.c.l.b16 %v257
        %v338 = vunpack.c.l.b16 %v258
        %v339 = vunpack.c.l.b16 %v259
        %v340 = vunpack.c.l.b16 %v260
        %v341 = vunpack.c.l.b16 %v261
        %v342 = vunpack.c.l.b16 %v262
        %v343 = vunpack.c.l.b16 %v263
        %v344 = vunpack.c.l.b16 %v264
        %v345 = vunpack.c.l.b16 %v265
        %v346 = vunpack.c.l.b16 %v266
        %v347 = vunpack.c.l.b16 %v267
        %v348 = vunpack.c.l.b16 %v268
        %v349 = vunpack.c.l.b16 %v269
        %v350 = vunpack.c.l.b16 %v270
        %v351 = vunpack.c.l.b16 %v271
        %v352 = vunpack.c.l.b16 %v272
        %v353 = vunpack.c.l.b16 %v273
        %v354 = vunpack.c.l.b16 %v274
        %v355 = vunpack.c.l.b16 %v275
        %v356 = vunpack.c.l.b16 %v276
        %v357 = vunpack.c.l.b16 %v277
        %v358 = vunpack.c.l.b16 %v278
        %v359 = vunpack.c.l.b16 %v279
        %v360 = vunpack.c.l.b16 %v280
        %v361 = vunpack.c.l.b16 %v281
        %v362 = vpack.c.b16 %v331, %v330
        %v363 = vpack.c.b16 %v333, %v332
        %v364 = vpack.c.b16 %v335, %v334
        %v365 = vpack.c.b16 %v337, %v336
        %v366 = vpack.c.b16 %v339, %v338
        %v367 = vpack.c.b16 %v341, %v340
        %v368 = vpack.c.b16 %v343, %v342
        %v369 = vpack.c.b16 %v345, %v344
        %v370 = vpack.c.b16 %v347, %v346
        %v371 = vpack.c.b16 %v349, %v348
        %v372 = vpack.c.b16 %v351, %v350
        %v373 = vpack.c.b16 %v353, %v352
        %v374 = vpack.c.b16 %v355, %v354
        %v375 = vpack.c.b16 %v357, %v356
        %v376 = vpack.c.b16 %v359, %v358
        %v377 = vpack.c.b16 %v361, %v360
        %v410 = vunpack.c.l.b16 %v282
        %v411 = vunpack.c.l.b16 %v283
        %v412 = vunpack.c.l.b16 %v284
        %v413 = vunpack.c.l.b16 %v285
        %v414 = vunpack.c.l.b16 %v286
        %v415 = vunpack.c.l.b16 %v287
        %v416 = vunpack.c.l.b16 %v288
        %v417 = vunpack.c.l.b16 %v289
        %v418 = vunpack.c.l.b16 %v290
        %v419 = vunpack.c.l.b16 %v291
        %v420 = vunpack.c.l.b16 %v292
        %v421 = vunpack.c.l.b16 %v293
        %v422 = vunpack.c.l.b16 %v294
        %v423 = vunpack.c.l.b16 %v295
        %v424 = vunpack.c.l.b16 %v296
        %v425 = vunpack.c.l.b16 %v297
        %v426 = vpack.c.b16 %v411, %v410
        %v427 = vpack.c.b16 %v413, %v412
        %v428 = vpack.c.b16 %v415, %v414
        %v429 = vpack.c.b16 %v417, %v416
        %v430 = vpack.c.b16 %v419, %v418
        %v431 = vpack.c.b16 %v421, %v420
        %v432 = vpack.c.b16 %v423, %v422
        %v433 = vpack.c.b16 %v425, %v424
        %442 = vmatprep.subr.bf16.mxu0 0
        %443 = vmatpush1.bf16.msra.mxu0 %v426
        %444 = vmatprep.subr.bf16.mxu0 0
        %445 = vmatpush1.bf16.msra.mxu0 %v427
        %446 = vmatprep.subr.bf16.mxu0 0
        %447 = vmatpush1.bf16.msra.mxu0 %v428
        %448 = vmatprep.subr.bf16.mxu0 0
        %449 = vmatpush1.bf16.msra.mxu0 %v429
        %450 = vmatprep.subr.bf16.mxu0 0
        %451 = vmatpush1.bf16.msra.mxu0 %v430
        %452 = vmatprep.subr.bf16.mxu0 0
        %453 = vmatpush1.bf16.msra.mxu0 %v431
        %454 = vmatprep.subr.bf16.mxu0 0
        %455 = vmatpush1.bf16.msra.mxu0 %v432
        %456 = vmatprep.subr.bf16.mxu0 0
        %457 = vmatpush1.bf16.msra.mxu0 %v433
        %458 = vmatprep.subr.bf16.mxu0 0
        %459 = vmatpush1.bf16.msra.mxu0 0
        %460 = vmatprep.subr.bf16.mxu0 0
        %461 = vmatpush1.bf16.msra.mxu0 0
        %462 = vmatprep.subr.bf16.mxu0 0
        %463 = vmatpush1.bf16.msra.mxu0 0
        %464 = vmatprep.subr.bf16.mxu0 0
        %465 = vmatpush1.bf16.msra.mxu0 0
        %466 = vmatprep.subr.bf16.mxu0 0
        %467 = vmatpush1.bf16.msra.mxu0 0
        %468 = vmatprep.subr.bf16.mxu0 0
        %469 = vmatpush1.bf16.msra.mxu0 0
        %470 = vmatprep.subr.bf16.mxu0 0
        %471 = vmatpush1.bf16.msra.mxu0 0
        %472 = vmatprep.subr.bf16.mxu0 0
        %473 = vmatpush1.bf16.msra.mxu0 0
        %474 = vmatprep.mubr.bf16.mxu0 0
        %475 = vmatmul.mubr.bf16.gmra.mrb[0].mxu0 %v362
        %v476 = vpop.f32.mrb[0].mxu0
        %v477 = vadd.f32 0.0, %v476
        %v478 = vpop.f32.mrb[0].mxu0
        %v479 = vpop.f32.mrb[0].mxu0
        %v480 = vadd.f32 0.0, %v479
        %v481 = vpop.f32.mrb[0].mxu0
        %482 = vmatprep.mubr.bf16.mxu0 0
        %483 = vmatmul.mubr.bf16.gmra.mrb[0].mxu0 %v363
        %v484 = vpop.f32.mrb[0].mxu0
        %v485 = vadd.f32 0.0, %v484
        %v486 = vpop.f32.mrb[0].mxu0
        %v487 = vpop.f32.mrb[0].mxu0
        %v488 = vadd.f32 0.0, %v487
        %v489 = vpop.f32.mrb[0].mxu0
        %490 = vmatprep.mubr.bf16.mxu0 0
        %491 = vmatmul.mubr.bf16.gmra.mrb[0].mxu0 %v364
        %v492 = vpop.f32.mrb[0].mxu0
        %v493 = vadd.f32 0.0, %v492
        %v494 = vpop.f32.mrb[0].mxu0
        %v495 = vpop.f32.mrb[0].mxu0
        %v496 = vadd.f32 0.0, %v495
        %v497 = vpop.f32.mrb[0].mxu0
        %498 = vmatprep.mubr.bf16.mxu0 0
        %499 = vmatmul.mubr.bf16.gmra.mrb[0].mxu0 %v365
        %v500 = vpop.f32.mrb[0].mxu0
        %v501 = vadd.f32 0.0, %v500
        %v502 = vpop.f32.mrb[0].mxu0
        %v503 = vpop.f32.mrb[0].mxu0
        %v504 = vadd.f32 0.0, %v503
        %v505 = vpop.f32.mrb[0].mxu0
        %506 = vmatprep.mubr.bf16.mxu0 0
        %507 = vmatmul.mubr.bf16.gmra.mrb[0].mxu0 %v366
        %v508 = vpop.f32.mrb[0].mxu0
        %v509 = vadd.f32 0.0, %v508
        %v510 = vpop.f32.mrb[0].mxu0
        %v511 = vpop.f32.mrb[0].mxu0
        %v512 = vadd.f32 0.0, %v511
        %v513 = vpop.f32.mrb[0].mxu0
        %514 = vmatprep.mubr.bf16.mxu0 0
        %515 = vmatmul.mubr.bf16.gmra.mrb[0].mxu0 %v367
        %v516 = vpop.f32.mrb[0].mxu0
        %v517 = vadd.f32 0.0, %v516
        %v518 = vpop.f32.mrb[0].mxu0
        %v519 = vpop.f32.mrb[0].mxu0
        %v520 = vadd.f32 0.0, %v519
        %v521 = vpop.f32.mrb[0].mxu0
        %522 = vmatprep.mubr.bf16.mxu0 0
        %523 = vmatmul.mubr.bf16.gmra.mrb[0].mxu0 %v368
        %v524 = vpop.f32.mrb[0].mxu0
        %v525 = vadd.f32 0.0, %v524
        %v526 = vpop.f32.mrb[0].mxu0
        %v527 = vpop.f32.mrb[0].mxu0
        %v528 = vadd.f32 0.0, %v527
        %v529 = vpop.f32.mrb[0].mxu0
        %530 = vmatprep.mubr.bf16.mxu0 0
        %531 = vmatmul.mubr.bf16.gmra.mrb[0].mxu0 %v369
        %v532 = vpop.f32.mrb[0].mxu0
        %v533 = vadd.f32 0.0, %v532
        %v534 = vpop.f32.mrb[0].mxu0
        %v535 = vpop.f32.mrb[0].mxu0
        %v536 = vadd.f32 0.0, %v535
        %v537 = vpop.f32.mrb[0].mxu0
        %538 = vmatprep.mubr.bf16.mxu0 0
        %539 = vmatmul.mubr.bf16.gmra.mrb[0].mxu0 %v370
        %v540 = vpop.f32.mrb[0].mxu0
        %v541 = vadd.f32 0.0, %v540
        %v542 = vpop.f32.mrb[0].mxu0
        %v543 = vpop.f32.mrb[0].mxu0
        %v544 = vadd.f32 0.0, %v543
        %v545 = vpop.f32.mrb[0].mxu0
        %546 = vmatprep.mubr.bf16.mxu0 0
        %547 = vmatmul.mubr.bf16.gmra.mrb[0].mxu0 %v371
        %v548 = vpop.f32.mrb[0].mxu0
        %v549 = vadd.f32 0.0, %v548
        %v550 = vpop.f32.mrb[0].mxu0
        %v551 = vpop.f32.mrb[0].mxu0
        %v552 = vadd.f32 0.0, %v551
        %v553 = vpop.f32.mrb[0].mxu0
        %554 = vmatprep.mubr.bf16.mxu0 0
        %555 = vmatmul.mubr.bf16.gmra.mrb[0].mxu0 %v372
        %v556 = vpop.f32.mrb[0].mxu0
        %v557 = vadd.f32 0.0, %v556
        %v558 = vpop.f32.mrb[0].mxu0
        %v559 = vpop.f32.mrb[0].mxu0
        %v560 = vadd.f32 0.0, %v559
        %v561 = vpop.f32.mrb[0].mxu0
        %562 = vmatprep.mubr.bf16.mxu0 0
        %563 = vmatmul.mubr.bf16.gmra.mrb[0].mxu0 %v373
        %v564 = vpop.f32.mrb[0].mxu0
        %v565 = vadd.f32 0.0, %v564
        %v566 = vpop.f32.mrb[0].mxu0
        %v567 = vpop.f32.mrb[0].mxu0
        %v568 = vadd.f32 0.0, %v567
        %v569 = vpop.f32.mrb[0].mxu0
        %570 = vmatprep.mubr.bf16.mxu0 0
        %571 = vmatmul.mubr.bf16.gmra.mrb[0].mxu0 %v374
        %v572 = vpop.f32.mrb[0].mxu0
        %v573 = vadd.f32 0.0, %v572
        %v574 = vpop.f32.mrb[0].mxu0
        %v575 = vpop.f32.mrb[0].mxu0
        %v576 = vadd.f32 0.0, %v575
        %v577 = vpop.f32.mrb[0].mxu0
        %578 = vmatprep.mubr.bf16.mxu0 0
        %579 = vmatmul.mubr.bf16.gmra.mrb[0].mxu0 %v375
        %v580 = vpop.f32.mrb[0].mxu0
        %v581 = vadd.f32 0.0, %v580
        %v582 = vpop.f32.mrb[0].mxu0
        %v583 = vpop.f32.mrb[0].mxu0
        %v584 = vadd.f32 0.0, %v583
        %v585 = vpop.f32.mrb[0].mxu0
        %586 = vmatprep.mubr.bf16.mxu0 0
        %587 = vmatmul.mubr.bf16.gmra.mrb[0].mxu0 %v376
        %v588 = vpop.f32.mrb[0].mxu0
        %v589 = vadd.f32 0.0, %v588
        %v590 = vpop.f32.mrb[0].mxu0
        %v591 = vpop.f32.mrb[0].mxu0
        %v592 = vadd.f32 0.0, %v591
        %v593 = vpop.f32.mrb[0].mxu0
        %594 = vmatprep.mubr.bf16.mxu0 0
        %595 = vmatmul.mubr.bf16.gmra.mrb[0].mxu0 %v377
        %v596 = vpop.f32.mrb[0].mxu0
        %v597 = vadd.f32 0.0, %v596
        %v598 = vpop.f32.mrb[0].mxu0
        %v599 = vpop.f32.mrb[0].mxu0
        %v600 = vadd.f32 0.0, %v599
        %v601 = vpop.f32.mrb[0].mxu0
        %602 = vdwg.mxu0
        %v603 = vpack.c.bf16 %v480, %v477
        %v604 = vpack.c.bf16 %v488, %v485
        %v605 = vpack.c.bf16 %v496, %v493
        %v606 = vpack.c.bf16 %v504, %v501
        %v607 = vpack.c.bf16 %v512, %v509
        %v608 = vpack.c.bf16 %v520, %v517
        %v609 = vpack.c.bf16 %v528, %v525
        %v610 = vpack.c.bf16 %v536, %v533
        %v611 = vpack.c.bf16 %v544, %v541
        %v612 = vpack.c.bf16 %v552, %v549
        %v613 = vpack.c.bf16 %v560, %v557
        %v614 = vpack.c.bf16 %v568, %v565
        %v615 = vpack.c.bf16 %v576, %v573
        %v616 = vpack.c.bf16 %v584, %v581
        %v617 = vpack.c.bf16 %v592, %v589
        %v618 = vpack.c.bf16 %v600, %v597
        %v635 = vunpack.c.l.b16 %v603
        %v636 = vunpack.c.h.b16 %v603
        %v637 = vunpack.c.l.b16 %v604
        %v638 = vunpack.c.h.b16 %v604
        %v639 = vunpack.c.l.b16 %v605
        %v640 = vunpack.c.h.b16 %v605
        %v641 = vunpack.c.l.b16 %v606
        %v642 = vunpack.c.h.b16 %v606
        %v643 = vunpack.c.l.b16 %v607
        %v644 = vunpack.c.h.b16 %v607
        %v645 = vunpack.c.l.b16 %v608
        %v646 = vunpack.c.h.b16 %v608
        %v647 = vunpack.c.l.b16 %v609
        %v648 = vunpack.c.h.b16 %v609
        %v649 = vunpack.c.l.b16 %v610
        %v650 = vunpack.c.h.b16 %v610
        %v651 = vunpack.c.l.b16 %v611
        %v652 = vunpack.c.h.b16 %v611
        %v653 = vunpack.c.l.b16 %v612
        %v654 = vunpack.c.h.b16 %v612
        %v655 = vunpack.c.l.b16 %v613
        %v656 = vunpack.c.h.b16 %v613
        %v657 = vunpack.c.l.b16 %v614
        %v658 = vunpack.c.h.b16 %v614
        %v659 = vunpack.c.l.b16 %v615
        %v660 = vunpack.c.h.b16 %v615
        %v661 = vunpack.c.l.b16 %v616
        %v662 = vunpack.c.h.b16 %v616
        %v663 = vunpack.c.l.b16 %v617
        %v664 = vunpack.c.h.b16 %v617
        %v665 = vunpack.c.l.b16 %v618
        %v666 = vunpack.c.h.b16 %v618
        %v667 = vpack.c.b16 %v635, %v635
        %v668 = vpack.c.b16 %v636, %v636
        %v669 = vpack.c.b16 %v637, %v637
        %v670 = vpack.c.b16 %v638, %v638
        %v671 = vpack.c.b16 %v639, %v639
        %v672 = vpack.c.b16 %v640, %v640
        %v673 = vpack.c.b16 %v641, %v641
        %v674 = vpack.c.b16 %v642, %v642
        %v675 = vpack.c.b16 %v643, %v643
        %v676 = vpack.c.b16 %v644, %v644
        %v677 = vpack.c.b16 %v645, %v645
        %v678 = vpack.c.b16 %v646, %v646
        %v679 = vpack.c.b16 %v647, %v647
        %v680 = vpack.c.b16 %v648, %v648
        %v681 = vpack.c.b16 %v649, %v649
        %v682 = vpack.c.b16 %v650, %v650
        %v683 = vpack.c.b16 %v651, %v651
        %v684 = vpack.c.b16 %v652, %v652
        %v685 = vpack.c.b16 %v653, %v653
        %v686 = vpack.c.b16 %v654, %v654
        %v687 = vpack.c.b16 %v655, %v655
        %v688 = vpack.c.b16 %v656, %v656
        %v689 = vpack.c.b16 %v657, %v657
        %v690 = vpack.c.b16 %v658, %v658
        %v691 = vpack.c.b16 %v659, %v659
        %v692 = vpack.c.b16 %v660, %v660
        %v693 = vpack.c.b16 %v661, %v661
        %v694 = vpack.c.b16 %v662, %v662
        %v695 = vpack.c.b16 %v663, %v663
        %v696 = vpack.c.b16 %v664, %v664
        %v697 = vpack.c.b16 %v665, %v665
        %v698 = vpack.c.b16 %v666, %v666
        %731 = vst [vmem:[%s234] sm:$0xf] %v667
        %732 = vst [vmem:[%s234 + $0x4] sm:$0xf] %v668
        %733 = vst [vmem:[%s234 + $0x8] sm:$0xf] %v669
        %734 = vst [vmem:[%s234 + $0xc] sm:$0xf] %v670
        %735 = vst [vmem:[%s234 + $0x10] sm:$0xf] %v671
        %736 = vst [vmem:[%s234 + $0x14] sm:$0xf] %v672
        %737 = vst [vmem:[%s234 + $0x18] sm:$0xf] %v673
        %738 = vst [vmem:[%s234 + $0x1c] sm:$0xf] %v674
        %739 = vst [vmem:[%s234 + $0x20] sm:$0xf] %v675
        %740 = vst [vmem:[%s234 + $0x24] sm:$0xf] %v676
        %741 = vst [vmem:[%s234 + $0x28] sm:$0xf] %v677
        %742 = vst [vmem:[%s234 + $0x2c] sm:$0xf] %v678
        %743 = vst [vmem:[%s234 + $0x30] sm:$0xf] %v679
        %744 = vst [vmem:[%s234 + $0x34] sm:$0xf] %v680
        %745 = vst [vmem:[%s234 + $0x38] sm:$0xf] %v681
        %746 = vst [vmem:[%s234 + $0x3c] sm:$0xf] %v682
        %747 = vst [vmem:[%s234 + $0x40] sm:$0xf] %v683
        %748 = vst [vmem:[%s234 + $0x44] sm:$0xf] %v684
        %749 = vst [vmem:[%s234 + $0x48] sm:$0xf] %v685
        %750 = vst [vmem:[%s234 + $0x4c] sm:$0xf] %v686
        %751 = vst [vmem:[%s234 + $0x50] sm:$0xf] %v687
        %752 = vst [vmem:[%s234 + $0x54] sm:$0xf] %v688
        %753 = vst [vmem:[%s234 + $0x58] sm:$0xf] %v689
        %754 = vst [vmem:[%s234 + $0x5c] sm:$0xf] %v690
        %755 = vst [vmem:[%s234 + $0x60] sm:$0xf] %v691
        %756 = vst [vmem:[%s234 + $0x64] sm:$0xf] %v692
        %757 = vst [vmem:[%s234 + $0x68] sm:$0xf] %v693
        %758 = vst [vmem:[%s234 + $0x6c] sm:$0xf] %v694
        %759 = vst [vmem:[%s234 + $0x70] sm:$0xf] %v695
        %760 = vst [vmem:[%s234 + $0x74] sm:$0xf] %v696
        %761 = vst [vmem:[%s234 + $0x78] sm:$0xf] %v697
        %762 = vst [vmem:[%s234 + $0x7c] sm:$0xf] %v698
        %v763 = vadd.f32 %v477, %v480
        %v764 = vadd.f32 %v763, %v485
        %v765 = vadd.f32 %v764, %v488
        %v766 = vadd.f32 %v765, %v493
        %v767 = vadd.f32 %v766, %v496
        %v768 = vadd.f32 %v767, %v501
        %v769 = vadd.f32 %v768, %v504
        %v770 = vadd.f32 %v769, %v509
        %v771 = vadd.f32 %v770, %v512
        %v772 = vadd.f32 %v771, %v517
        %v773 = vadd.f32 %v772, %v520
        %v774 = vadd.f32 %v773, %v525
        %v775 = vadd.f32 %v774, %v528
        %v776 = vadd.f32 %v775, %v533
        %v777 = vadd.f32 %v776, %v536
        %v778 = vadd.f32 %v777, %v541
        %v779 = vadd.f32 %v778, %v544
        %v780 = vadd.f32 %v779, %v549
        %v781 = vadd.f32 %v780, %v552
        %v782 = vadd.f32 %v781, %v557
        %v783 = vadd.f32 %v782, %v560
        %v784 = vadd.f32 %v783, %v565
        %v785 = vadd.f32 %v784, %v568
        %v786 = vadd.f32 %v785, %v573
        %v787 = vadd.f32 %v786, %v576
        %v788 = vadd.f32 %v787, %v581
        %v789 = vadd.f32 %v788, %v584
        %v790 = vadd.f32 %v789, %v589
        %v791 = vadd.f32 %v790, %v592
        %v792 = vadd.f32 %v791, %v597
        %v793 = vadd.f32 %v792, %v600
        %v794 = vrot.slane %v793, 4
        %v795 = vadd.f32 %v793, %v794
        %v796 = vrot.slane %v795, 2
        %v797 = vadd.f32 %v795, %v796
        %v798 = vrot.slane %v797, 1
        %v799 = vadd.f32 %v797, %v798
        %800 = vst [vmem:[%s240] sm:$0x1] %v799
        %v801 = vmul.f32 %v477, %v477
        %v802 = vmul.f32 %v480, %v480
        %v803 = vmul.f32 %v485, %v485
        %v804 = vmul.f32 %v488, %v488
        %v805 = vmul.f32 %v493, %v493
        %v806 = vmul.f32 %v496, %v496
        %v807 = vmul.f32 %v501, %v501
        %v808 = vmul.f32 %v504, %v504
        %v809 = vmul.f32 %v509, %v509
        %v810 = vmul.f32 %v512, %v512
        %v811 = vmul.f32 %v517, %v517
        %v812 = vmul.f32 %v520, %v520
        %v813 = vmul.f32 %v525, %v525
        %v814 = vmul.f32 %v528, %v528
        %v815 = vmul.f32 %v533, %v533
        %v816 = vmul.f32 %v536, %v536
        %v817 = vmul.f32 %v541, %v541
        %v818 = vmul.f32 %v544, %v544
        %v819 = vmul.f32 %v549, %v549
        %v820 = vmul.f32 %v552, %v552
        %v821 = vmul.f32 %v557, %v557
        %v822 = vmul.f32 %v560, %v560
        %v823 = vmul.f32 %v565, %v565
        %v824 = vmul.f32 %v568, %v568
        %v825 = vmul.f32 %v573, %v573
        %v826 = vmul.f32 %v576, %v576
        %v827 = vmul.f32 %v581, %v581
        %v828 = vmul.f32 %v584, %v584
        %v829 = vmul.f32 %v589, %v589
        %v830 = vmul.f32 %v592, %v592
        %v831 = vmul.f32 %v597, %v597
        %v832 = vmul.f32 %v600, %v600
        %v833 = vadd.f32 %v801, %v802
        %v834 = vadd.f32 %v833, %v803
        %v835 = vadd.f32 %v834, %v804
        %v836 = vadd.f32 %v835, %v805
        %v837 = vadd.f32 %v836, %v806
        %v838 = vadd.f32 %v837, %v807
        %v839 = vadd.f32 %v838, %v808
        %v840 = vadd.f32 %v839, %v809
        %v841 = vadd.f32 %v840, %v810
        %v842 = vadd.f32 %v841, %v811
        %v843 = vadd.f32 %v842, %v812
        %v844 = vadd.f32 %v843, %v813
        %v845 = vadd.f32 %v844, %v814
        %v846 = vadd.f32 %v845, %v815
        %v847 = vadd.f32 %v846, %v816
        %v848 = vadd.f32 %v847, %v817
        %v849 = vadd.f32 %v848, %v818
        %v850 = vadd.f32 %v849, %v819
        %v851 = vadd.f32 %v850, %v820
        %v852 = vadd.f32 %v851, %v821
        %v853 = vadd.f32 %v852, %v822
        %v854 = vadd.f32 %v853, %v823
        %v855 = vadd.f32 %v854, %v824
        %v856 = vadd.f32 %v855, %v825
        %v857 = vadd.f32 %v856, %v826
        %v858 = vadd.f32 %v857, %v827
        %v859 = vadd.f32 %v858, %v828
        %v860 = vadd.f32 %v859, %v829
        %v861 = vadd.f32 %v860, %v830
        %v862 = vadd.f32 %v861, %v831
        %v863 = vadd.f32 %v862, %v832
        %v864 = vrot.slane %v863, 4
        %v865 = vadd.f32 %v863, %v864
        %v866 = vrot.slane %v865, 2
        %v867 = vadd.f32 %v865, %v866
        %v868 = vrot.slane %v867, 1
        %v869 = vadd.f32 %v867, %v868
        %870 = vst [vmem:[%s246] sm:$0x1] %v869
        %s871 = sand.u32 %s81, 1
        %s872 = scalar_lea.sflag [#allocation4], %s871
        %s873 = sand.u32 %s81, 1
        %s874 = smul.addr %s873, 128
        %s875 = scalar_lea.vmem [#allocation7], %s874
        %s876 = sand.u32 %s26, 1
        %s877 = scalar_lea.sflag [#allocation9], %s876
        %s878 = sand.u32 %s107, 1
        %s879 = scalar_lea.vmem [#allocation8], %s878
        %s880 = sand.u32 %s26, 1
        %s881 = scalar_lea.sflag [#allocation9], %s880
        %s882 = sand.u32 %s133, 1
        %s883 = scalar_lea.vmem [#allocation10], %s882
        // Predicated region
        $region37: #{aspp_forward.2} parent=27 // pred_check
          %p884 = pneg %p91
        $region38: #{aspp_forward.2} parent=27 // pred_check_branch
          %886 = sbr.rel (%p884) target = $region40
        $region39: #{aspp_forward.2} parent=27 // pred_region
          %s887 = smul.u32 32, %s26
          %s889 = ssub.s32 2048, 2048
          %890 = vsyncadd %s872, %s889
          %s891 = smul.addr %s887, 64
          %s892 = scalar_lea.hbm %s2, %s891
          %s893 = sshll.u32 %s875, 4
          %s894 = int_to_ptr.vmem [resolvable:$true] %s893
          %899 = dma.vmem_to_hbm [thread:$0]  %s894, 2048, %s892, %s872, 64, 64, 4
        $region40: #{aspp_forward.2} parent=27 // pred_fallthru
          _
        // Predicated region
        $region41: #{aspp_forward.2} parent=27 // pred_check
          %p900 = pneg %p117
        $region42: #{aspp_forward.2} parent=27 // pred_check_branch
          %902 = sbr.rel (%p900) target = $region44
        $region43: #{aspp_forward.2} parent=27 // pred_region
          %s904 = ssub.s32 16, 16
          %905 = vsyncadd %s877, %s904
          %s906 = smul.addr %s26, 16
          %s907 = scalar_lea.hbm %s3, %s906
          %s909 = sshll.u32 %s879, 4
          %s910 = int_to_ptr.vmem [resolvable:$true] %s909
          %912 = dma.vmem_to_hbm [thread:$0]  %s910, 16, %s907, %s877
        $region44: #{aspp_forward.2} parent=27 // pred_fallthru
          _
        // Predicated region
        $region45: #{aspp_forward.2} parent=27 // pred_check
          %p913 = pneg %p143
        $region46: #{aspp_forward.2} parent=27 // pred_check_branch
          %915 = sbr.rel (%p913) target = $region48
        $region47: #{aspp_forward.2} parent=27 // pred_region
          %s917 = ssub.s32 16, 16
          %918 = vsyncadd %s881, %s917
          %s919 = smul.addr %s26, 16
          %s920 = scalar_lea.hbm %s4, %s919
          %s922 = sshll.u32 %s883, 4
          %s923 = int_to_ptr.vmem [resolvable:$true] %s922
          %925 = dma.vmem_to_hbm [thread:$0]  %s923, 16, %s920, %s881
        $region48: #{aspp_forward.2} parent=27 // pred_fallthru
          _
      $region28: #{aspp_forward.2} parent=5 // pred_fallthru
        _
      %p926 = scmp.le.s32.totalorder 2, %s21
      // Predicated region
      $region49: #{aspp_forward.2} parent=5 // pred_check
        %p927 = pneg %p926
      $region50: #{aspp_forward.2} parent=5 // pred_check_branch
        %929 = sbr.rel (%p927) target = $region52
      $region51: #{aspp_forward.2} parent=5 // pred_region
        %s930 = ssub.s32 %s21, 2
        // Predicated region
        $region53: #{aspp_forward.2} parent=51 // pred_check
          %p931 = pneg %p97
        $region54: #{aspp_forward.2} parent=51 // pred_check_branch
          %933 = sbr.rel (%p931) target = $region56
        $region55: #{aspp_forward.2} parent=51 // pred_region
          %s934 = sand.u32 %s82, 1
          %s935 = scalar_lea.sflag [#allocation4], %s934
          %s936 = sand.u32 %s82, 1
          %s937 = smul.addr %s936, 128
          %s938 = scalar_lea.vmem [#allocation7], %s937
          %939 = dma.done %s935, 2048
        $region56: #{aspp_forward.2} parent=51 // pred_fallthru
          _
        // Predicated region
        $region57: #{aspp_forward.2} parent=51 // pred_check
          %p940 = pneg %p123
        $region58: #{aspp_forward.2} parent=51 // pred_check_branch
          %942 = sbr.rel (%p940) target = $region60
        $region59: #{aspp_forward.2} parent=51 // pred_region
          %s943 = sand.u32 %s27, 1
          %s944 = scalar_lea.sflag [#allocation9], %s943
          %s945 = sand.u32 %s108, 1
          %s946 = scalar_lea.vmem [#allocation8], %s945
          %947 = dma.done %s944, 16
        $region60: #{aspp_forward.2} parent=51 // pred_fallthru
          _
        // Predicated region
        $region61: #{aspp_forward.2} parent=51 // pred_check
          %p948 = pneg %p149
        $region62: #{aspp_forward.2} parent=51 // pred_check_branch
          %950 = sbr.rel (%p948) target = $region64
        $region63: #{aspp_forward.2} parent=51 // pred_region
          %s951 = sand.u32 %s27, 1
          %s952 = scalar_lea.sflag [#allocation9], %s951
          %s953 = sand.u32 %s134, 1
          %s954 = scalar_lea.vmem [#allocation10], %s953
          %955 = dma.done %s952, 16
        $region64: #{aspp_forward.2} parent=51 // pred_fallthru
          _
      $region52: #{aspp_forward.2} parent=5 // pred_fallthru
        _
    $region6: #{aspp_forward.2} parent=1 // loop_footer
      %s25 = sadd.s32 1, %s21
    $region7: #{aspp_forward.2} parent=1 // loop_footer_branch
      %20 = sbr.rel target = $region3
    $region8: #{aspp_forward.2} parent=1 // loop_exit
      _
    %956 = vsyncpa [#allocation3], 1
    %s957 = scalar_lea.sflag [#allocation3], 1
    %958 = vsyncpa %s957, 1
    %959 = vsyncpa [#allocation6], 1
    %960 = vsyncpa [#allocation4], 1
    %s961 = scalar_lea.sflag [#allocation4], 1
    %962 = vsyncpa %s961, 1
    %963 = vsyncpa [#allocation9], 1
    %s964 = scalar_lea.sflag [#allocation9], 1
    %965 = vsyncpa %s964, 1

</llo_original>
